<compile_context>
chip_gen: v7x
topology: tpu7x:2x2x1
jax: 0.10.0
libtpu: 0.0.40
codegen_flags: <defaults>
</compile_context>

<pallas_src>
import random

import jax
import jax.numpy as jnp
from jax import lax
from jax.experimental import pallas as pl
from jax.experimental.pallas import tpu as pltpu

_VMEM = pl.BlockSpec(memory_space=pltpu.MemorySpace.VMEM)
_SMEM = pl.BlockSpec(memory_space=pltpu.MemorySpace.SMEM)
_LANE = 128
_SUB = 8


def _round_up(x, m):
    return ((x + m - 1) // m) * m


# ----------------------------- encoder kernel (grid over time) --------------- #

def _encoder_kernel(gi_ref, m_ref, whh_ref, bhh_ref, fcw_ref, fcb_ref,
                    of_ref, ob_ref, hid_ref, h_ref):
    """One grid step = one time step of the fused bidirectional GRU.

    State h_ref is [Bp, 2*Hp]: lanes [0,Hp) fwd direction, [Hp,2Hp) bwd direction
    (each direction's H real lanes zero-padded to Hp=128).  gi_ref[0] holds the
    precomputed, gate-aligned input projections [r_f r_b | z_f z_b | n_f n_b]
    pairing fwd time i with bwd time S-1-i; m_ref is the matching validity mask.
    Fwd hidden is stored to of_ref (row i), bwd hidden to ob_ref (row S-1-i via
    its index_map), both as 128-lane dense stores.
    """
    i = pl.program_id(0)
    Hp = of_ref.shape[2]
    G = 2 * Hp                                      # fused fwd|bwd gate block width

    @pl.when(i == 0)
    def _():
        h_ref[...] = jnp.zeros_like(h_ref)

    h = h_ref[...]                                              # [Bp, 2Hp]
    gi = gi_ref[0]                                              # [Bp, 6Hp]
    gh = jnp.dot(h, whh_ref[...], preferred_element_type=jnp.float32) + bhh_ref[...]
    r = jax.nn.sigmoid(gi[:, 0:G] + gh[:, 0:G])
    z = jax.nn.sigmoid(gi[:, G:2 * G] + gh[:, G:2 * G])
    n = jnp.tanh(gi[:, 2 * G:3 * G] + r * gh[:, 2 * G:3 * G])
    h_upd = (1.0 - z) * n + z * h

    m = m_ref[0]                                                # [Bp, 2Hp]
    h = m * h_upd + (1.0 - m) * h                # carry hidden through padding
    h_ref[...] = h
    out = h * m                                  # pad_packed: zeros on pad steps
    of_ref[0] = out[:, 0:Hp]
    ob_ref[0] = out[:, Hp:2 * Hp]

    @pl.when(i == pl.num_programs(0) - 1)
    def _():
        hid_ref[...] = jnp.tanh(
            jnp.dot(h, fcw_ref[...], preferred_element_type=jnp.float32) + fcb_ref[...])


# ----------------------------- decoder kernel -------------------------------- #

def _decoder_kernel(tf_ref, hid0_ref, ee_ref, enct_ref, mask_ref, trg_ref, emb_ref,
                    v_ref, whid_ref, winp_ref, wctx_ref, bih_ref, bhh_ref, ob_ref,
                    out_ref, attn_ref, h_ref, part_ref):
    """Whole decoder loop (attention + GRU cell + vocab projection + greedy feedback).

    All per-gate / per-block weight columns are padded to 128-lane boundaries, so
    every slice below is tile-aligned.  G = padded decoder-hidden width (=128).
    whid layout: [attn_wh | whh_r | whh_z | whh_n | ow_h] (ow_h finalizes the
    PREVIOUS step's logits -> one fused push per step keyed on hidden_{t-1}).
    winp = [wih_e gates | ow_e], wctx = [wih_w gates | ow_w].
    """
    S = trg_ref.shape[0]
    Bp = hid0_ref.shape[0]
    G = hid0_ref.shape[1]
    Hd = ee_ref.shape[2]
    Vp = ob_ref.shape[1]
    Sp = attn_ref.shape[2]

    # only row 0 zeroed (matches torch.zeros + loop from t=1); rows 1.. overwritten
    out_ref[0] = jnp.zeros((Bp, Vp), jnp.float32)
    attn_ref[0] = jnp.zeros((Bp, Sp), jnp.float32)
    h_ref[...] = hid0_ref[...]
    part_ref[...] = jnp.zeros((Bp, Vp), jnp.float32)

    def step(t, carry):
        hidden = h_ref[...]                                     # [Bp, G]
        # ONE fused push for everything keyed on hidden_{t-1}
        big = jnp.dot(hidden, whid_ref[...], preferred_element_type=jnp.float32)
        gh = big[:, G:4 * G] + bhh_ref[...]
        logits_prev = big[:, 4 * G:4 * G + Vp] + part_ref[...]   # step t-1 logits

        @pl.when(t > 1)
        def _():
            out_ref[t - 1] = logits_prev

        # ---- next-input selection: runtime TF flag (SMEM) or greedy argmax ----
        teach = tf_ref[t - 1]
        emb_tf = trg_ref[t - 1]                                  # [Bp, E]
        iota = lax.broadcasted_iota(jnp.int32, (Bp, Vp), 1)
        top = jnp.max(logits_prev, axis=-1, keepdims=True)
        first = jnp.min(jnp.where(logits_prev >= top, iota, Vp), axis=-1, keepdims=True)
        onehot = (iota == first).astype(jnp.float32)
        # TODO(synk): at real vocab replace the one-hot matmul with a dynamic row
        # gather from emb_ref; one-hot is only acceptable at toy vocab.
        emb_greedy = jnp.dot(onehot, emb_ref[...], preferred_element_type=jnp.float32)
        inp_emb = jnp.where(teach > 0, emb_tf, emb_greedy)

        # ---- additive (Bahdanau) attention on hidden_{t-1} ----
        e_h = big[:, 0:Hd]
        energy = jnp.tanh(e_h[:, None, :] + ee_ref[...])          # [Bp, Sp, Hd]
        scores = jnp.sum(energy * v_ref[...][None, :, :], axis=-1)  # [Bp, Sp]
        scores = jnp.where(mask_ref[...] > 0.0, scores, -1e10)
        mx = jnp.max(scores, axis=-1, keepdims=True)
        ex = jnp.exp(scores - mx)
        a = ex / jnp.sum(ex, axis=-1, keepdims=True)              # exact softmax
        attn_ref[t] = a
        weighted = jnp.sum(a[:, None, :] * enct_ref[...], axis=-1)  # [Bp, 2*enc_h]

        # ---- fused input/context pushes: GRU gates + out-projection partials ----
        ge = jnp.dot(inp_emb, winp_ref[...], preferred_element_type=jnp.float32)
        gw = jnp.dot(weighted, wctx_ref[...], preferred_element_type=jnp.float32)
        gi = ge[:, 0:3 * G] + gw[:, 0:3 * G] + bih_ref[...]
        r = jax.nn.sigmoid(gi[:, 0:G] + gh[:, 0:G])
        z = jax.nn.sigmoid(gi[:, G:2 * G] + gh[:, G:2 * G])
        n = jnp.tanh(gi[:, 2 * G:3 * G] + r * gh[:, 2 * G:3 * G])
        h_ref[...] = (1.0 - z) * n + z * hidden
        part_ref[...] = ge[:, 3 * G:3 * G + Vp] + gw[:, 3 * G:3 * G + Vp] + ob_ref[...]
        return carry

    lax.fori_loop(1, S, step, 0)

    if S > 1:  # finalize the last step's logits (its hidden part was deferred)
        out_ref[S - 1] = (jnp.dot(h_ref[...], whid_ref[:, 4 * G:4 * G + Vp],
                                  preferred_element_type=jnp.float32) + part_ref[...])


# ------------------------------ parameters ----------------------------------- #

def _uniform(key, shape, bound):
    return jax.random.uniform(key, shape, jnp.float32, -bound, bound)


def init_params(key, src_vocab, trg_vocab, emb_dim, enc_h, dec_h):
    ks = jax.random.split(key, 24)
    it = iter(range(24))
    p = {}
    p['enc_emb'] = jax.random.normal(ks[next(it)], (src_vocab, emb_dim), jnp.float32)
    be = 1.0 / (enc_h ** 0.5)
    for d in ('f', 'b'):  # forward / backward directions of the bi-GRU
        p[f'enc_wih_{d}'] = _uniform(ks[next(it)], (emb_dim, 3 * enc_h), be)
        p[f'enc_whh_{d}'] = _uniform(ks[next(it)], (enc_h, 3 * enc_h), be)
        p[f'enc_bih_{d}'] = _uniform(ks[next(it)], (1, 3 * enc_h), be)
        p[f'enc_bhh_{d}'] = _uniform(ks[next(it)], (1, 3 * enc_h), be)
    bf = 1.0 / ((2 * enc_h) ** 0.5)
    p['enc_fc_w'] = _uniform(ks[next(it)], (2 * enc_h, dec_h), bf)
    p['enc_fc_b'] = _uniform(ks[next(it)], (1, dec_h), bf)
    # additive attention: Linear(dec_h + 2*enc_h -> dec_h), v: Linear(dec_h -> 1)
    ba = 1.0 / ((2 * enc_h + dec_h) ** 0.5)
    p['attn_wh'] = _uniform(ks[next(it)], (dec_h, dec_h), ba)
    p['attn_we'] = _uniform(ks[next(it)], (2 * enc_h, dec_h), ba)
    p['attn_b'] = _uniform(ks[next(it)], (1, dec_h), ba)
    p['attn_v'] = _uniform(ks[next(it)], (1, dec_h), 1.0 / (dec_h ** 0.5))
    p['dec_emb'] = jax.random.normal(ks[next(it)], (trg_vocab, emb_dim), jnp.float32)
    bd = 1.0 / (dec_h ** 0.5)
    p['dec_wih'] = _uniform(ks[next(it)], (2 * enc_h + emb_dim, 3 * dec_h), bd)
    p['dec_whh'] = _uniform(ks[next(it)], (dec_h, 3 * dec_h), bd)
    p['dec_bih'] = _uniform(ks[next(it)], (1, 3 * dec_h), bd)
    p['dec_bhh'] = _uniform(ks[next(it)], (1, 3 * dec_h), bd)
    bo = 1.0 / ((2 * enc_h + dec_h + emb_dim) ** 0.5)
    p['dec_out_w'] = _uniform(ks[next(it)], (2 * enc_h + dec_h + emb_dim, trg_vocab), bo)
    p['dec_out_b'] = _uniform(ks[next(it)], (1, trg_vocab), bo)
    return p


# ------------------------------ forward pass ---------------------------------- #

def _encoder_forward(params, src, src_len):
    S, B = src.shape
    H = params['enc_whh_f'].shape[0]               # encoder hidden size
    Hd = params['enc_fc_w'].shape[1]               # decoder hidden size
    Hp = _round_up(H, _LANE)                       # per-direction padded lane width
    Hdp = _round_up(Hd, _LANE)
    Bp = _round_up(max(B, _SUB), _SUB)

    emb = params['enc_emb'][src]                                             # [S,B,E]

    # ---- loop-invariant precompute: input projections for ALL timesteps ----
    gi_f = jnp.einsum('sbe,eg->sbg', emb, params['enc_wih_f']) + params['enc_bih_f']
    gi_b = (jnp.einsum('sbe,eg->sbg', emb, params['enc_wih_b'])
            + params['enc_bih_b'])[::-1]           # bwd rows time-reversed
    # scatter into the gate-aligned interleaved layout [r_f r_b | z_f z_b | n_f n_b]
    gi = jnp.zeros((S, Bp, 6 * Hp), jnp.float32)
    for g in range(3):
        gi = gi.at[:, :B, 2 * g * Hp:2 * g * Hp + H].set(gi_f[..., g * H:(g + 1) * H])
        gi = gi.at[:, :B, (2 * g + 1) * Hp:(2 * g + 1) * Hp + H].set(
            gi_b[..., g * H:(g + 1) * H])

    step_mask = (jnp.arange(S)[:, None] < src_len[None, :]).astype(jnp.float32)
    mpad = jnp.zeros((S, Bp), jnp.float32).at[:, :B].set(step_mask)
    mcat = jnp.concatenate(
        [jnp.broadcast_to(mpad[:, :, None], (S, Bp, Hp)),
         jnp.broadcast_to(mpad[::-1][:, :, None], (S, Bp, Hp))], axis=-1)    # [S,Bp,2Hp]

    # block-diagonal recurrent weight: one MXU push serves both directions
    wf, wb = params['enc_whh_f'], params['enc_whh_b']
    whh = jnp.zeros((2 * Hp, 6 * Hp), jnp.float32)
    bhh = jnp.zeros((1, 6 * Hp), jnp.float32)
    for g in range(3):
        whh = whh.at[0:H, 2 * g * Hp:2 * g * Hp + H].set(wf[:, g * H:(g + 1) * H])
        whh = whh.at[Hp:Hp + H, (2 * g + 1) * Hp:(2 * g + 1) * Hp + H].set(
            wb[:, g * H:(g + 1) * H])
        bhh = bhh.at[0, 2 * g * Hp:2 * g * Hp + H].set(
            params['enc_bhh_f'][0, g * H:(g + 1) * H])
        bhh = bhh.at[0, (2 * g + 1) * Hp:(2 * g + 1) * Hp + H].set(
            params['enc_bhh_b'][0, g * H:(g + 1) * H])

    fcw = jnp.zeros((2 * Hp, Hdp), jnp.float32)
    fcw = fcw.at[0:H, 0:Hd].set(params['enc_fc_w'][0:H, :])
    fcw = fcw.at[Hp:Hp + H, 0:Hd].set(params['enc_fc_w'][H:2 * H, :])
    fcb = jnp.zeros((1, Hdp), jnp.float32).at[0, 0:Hd].set(params['enc_fc_b'][0])

    out_f, out_b, hid0 = pl.pallas_call(
        _encoder_kernel,
        grid=(S,),
        out_shape=(jax.ShapeDtypeStruct((S, Bp, Hp), jnp.float32),
                   jax.ShapeDtypeStruct((S, Bp, Hp), jnp.float32),
                   jax.ShapeDtypeStruct((Bp, Hdp), jnp.float32)),
        in_specs=[pl.BlockSpec((1, Bp, 6 * Hp), lambda i: (i, 0, 0)),
                  pl.BlockSpec((1, Bp, 2 * Hp), lambda i: (i, 0, 0)),
                  pl.BlockSpec((2 * Hp, 6 * Hp), lambda i: (0, 0)),
                  pl.BlockSpec((1, 6 * Hp), lambda i: (0, 0)),
                  pl.BlockSpec((2 * Hp, Hdp), lambda i: (0, 0)),
                  pl.BlockSpec((1, Hdp), lambda i: (0, 0))],
        out_specs=(pl.BlockSpec((1, Bp, Hp), lambda i: (i, 0, 0)),
                   pl.BlockSpec((1, Bp, Hp), lambda i: (S - 1 - i, 0, 0)),   # un-reversed
                   pl.BlockSpec((Bp, Hdp), lambda i: (0, 0))),
        scratch_shapes=[pltpu.VMEM((Bp, 2 * Hp), jnp.float32)],
        compiler_params=pltpu.CompilerParams(
            dimension_semantics=("arbitrary",),
            vmem_limit_bytes=32 * 1024 * 1024),
    )(gi, mcat, whh, bhh, fcw, fcb)
    return out_f, out_b, hid0, Hp, Hdp, Bp


def seq2seq_forward(params, src, src_len, trg, pad_index, teacher_forcing_ratio=0.3):
    S, B = src.shape
    H = params['enc_whh_f'].shape[0]
    H2 = 2 * H
    Hd = params['dec_whh'].shape[0]
    E = params['dec_emb'].shape[1]
    V = params['dec_out_w'].shape[1]

    out_f, out_b, hid0, Hp, Hdp, Bp = _encoder_forward(params, src, src_len)
    G = Hdp                                        # per-gate padded lane width
    Vp = _round_up(V, _LANE)
    Sp = _round_up(S, _LANE)

    # ---- decoder loop-invariant precompute (once per call) ----
    we = params['attn_we']
    we_f = jnp.zeros((Hp, Hd), jnp.float32).at[0:H, :].set(we[0:H, :])
    we_b = jnp.zeros((Hp, Hd), jnp.float32).at[0:H, :].set(we[H:2 * H, :])
    e_sb = (jnp.einsum('sbh,hd->sbd', out_f, we_f)
            + jnp.einsum('sbh,hd->sbd', out_b, we_b) + params['attn_b'])     # [S,Bp,Hd]
    e_e = jnp.zeros((Bp, Sp, Hd), jnp.float32).at[:, 0:S, :].set(
        jnp.transpose(e_sb, (1, 0, 2)))

    enc_bs = jnp.concatenate([out_f[..., 0:H], out_b[..., 0:H]], axis=-1)    # [S,Bp,2H]
    enc_t = jnp.zeros((Bp, H2, Sp), jnp.float32).at[:, :, 0:S].set(
        jnp.transpose(enc_bs, (1, 2, 0)))
    amask = jnp.zeros((Bp, Sp), jnp.float32).at[0:B, 0:S].set(
        (src != pad_index).astype(jnp.float32).T)
    trg_emb = jnp.zeros((S, Bp, E), jnp.float32).at[:, 0:B, :].set(params['dec_emb'][trg])
    dec_emb_p = jnp.zeros((Vp, E), jnp.float32).at[0:V, :].set(params['dec_emb'])

    # ---- fused, gate-aligned weights (same-LHS matmuls share one push) ----
    wo = params['dec_out_w']     # rows: [hidden(Hd) | weighted(2H) | emb(E)]
    whh_d, wih_d = params['dec_whh'], params['dec_wih']
    wih_e, wih_w = wih_d[0:E, :], wih_d[E:E + H2, :]
    ow_w, ow_e = wo[Hd:Hd + H2, :], wo[Hd + H2:Hd + H2 + E, :]

    w_hid = jnp.zeros((Hdp, 4 * G + Vp), jnp.float32)
    w_hid = w_hid.at[0:Hd, 0:Hd].set(params['attn_wh'])
    for g in range(3):
        w_hid = w_hid.at[0:Hd, (g + 1) * G:(g + 1) * G + Hd].set(
            whh_d[:, g * Hd:(g + 1) * Hd])
    w_hid = w_hid.at[0:Hd, 4 * G:4 * G + V].set(wo[0:Hd, :])

    w_inp = jnp.zeros((E, 3 * G + Vp), jnp.float32)
    w_ctx = jnp.zeros((H2, 3 * G + Vp), jnp.float32)
    bih = jnp.zeros((1, 3 * G), jnp.float32)
    bhh = jnp.zeros((1, 3 * G), jnp.float32)
    for g in range(3):
        w_inp = w_inp.at[:, g * G:g * G + Hd].set(wih_e[:, g * Hd:(g + 1) * Hd])
        w_ctx = w_ctx.at[:, g * G:g * G + Hd].set(wih_w[:, g * Hd:(g + 1) * Hd])
        bih = bih.at[0, g * G:g * G + Hd].set(params['dec_bih'][0, g * Hd:(g + 1) * Hd])
        bhh = bhh.at[0, g * G:g * G + Hd].set(params['dec_bhh'][0, g * Hd:(g + 1) * Hd])
    w_inp = w_inp.at[:, 3 * G:3 * G + V].set(ow_e)
    w_ctx = w_ctx.at[:, 3 * G:3 * G + V].set(ow_w)
    # -1e30 bias on padded vocab lanes so argmax never selects them
    ob = jnp.full((1, Vp), -1e30, jnp.float32).at[0, 0:V].set(params['dec_out_b'][0])

    # ---- runtime teacher-forcing flags (SMEM input -> no recompile on change) ----
    rng = random.Random(0)
    draws = [1 if rng.random() < teacher_forcing_ratio else 0 for _ in range(1, S)]
    use_trg = jnp.array([1] + draws, dtype=jnp.int32)   # use_trg[t-1] gates step t input

    outs, attns = pl.pallas_call(
        _decoder_kernel,
        out_shape=(jax.ShapeDtypeStruct((S, Bp, Vp), jnp.float32),
                   jax.ShapeDtypeStruct((S, Bp, Sp), jnp.float32)),
        in_specs=[_SMEM] + [_VMEM] * 13,
        out_specs=(_VMEM, _VMEM),
        scratch_shapes=[pltpu.VMEM((Bp, Hdp), jnp.float32),
                        pltpu.VMEM((Bp, Vp), jnp.float32)],
        compiler_params=pltpu.CompilerParams(vmem_limit_bytes=32 * 1024 * 1024),
    )(use_trg, hid0, e_e, enc_t, amask, trg_emb, dec_emb_p,
      params['attn_v'], w_hid, w_inp, w_ctx, bih, bhh, ob)
    # TODO(synk): at real vocab / long sequences stream the vocab projection and
    # out_ref per step via a grid + BlockSpec (v7x 64 MiB VMEM budget); inference
    # early-exit on <eos> (host .item()) is host-side control flow, not applicable here.
    outputs = outs[:, 0:B, 0:V]
    attentions = attns[:, 0:B, 0:S]
    return outputs, attentions


# ------------------------------------ main ------------------------------------ #

if __name__ == "__main__":
    SRC_VOCAB = TRG_VOCAB = 32
    EMB = 16
    ENC_H = 16
    DEC_H = 32
    S, B = 8, 2
    PAD, SOS, EOS = 0, 1, 2

    key = jax.random.PRNGKey(0)
    kp, ksrc, ktrg = jax.random.split(key, 3)
    params = init_params(kp, SRC_VOCAB, TRG_VOCAB, EMB, ENC_H, DEC_H)

    src_len = jnp.array([8, 6], dtype=jnp.int32)          # descending, like pack_padded
    src = jax.random.randint(ksrc, (S, B), 3, SRC_VOCAB, dtype=jnp.int32)
    valid = jnp.arange(S)[:, None] < src_len[None, :]
    src = jnp.where(valid, src, PAD)
    src = src.at[0, :].set(SOS)
    trg = jax.random.randint(ktrg, (S, B), 3, TRG_VOCAB, dtype=jnp.int32)
    trg = trg.at[0, :].set(SOS)

    outputs, attentions = seq2seq_forward(params, src, src_len, trg, PAD,
                                          teacher_forcing_ratio=0.3)
    jax.block_until_ready((outputs, attentions))
    assert outputs.shape == (S, B, TRG_VOCAB), outputs.shape
    assert attentions.shape == (S, B, S), attentions.shape
    assert bool(jnp.all(jnp.isfinite(outputs))) and bool(jnp.all(jnp.isfinite(attentions)))
    print("KERNEL_OK")
</pallas_src>

<mosaic_0001>
module attributes {stable_mosaic.version = 11 : i64} {
  func.func @_encoder_kernel(%arg0: i32, %arg1: memref<1x8x768xf32, #tpu.memory_space<vmem>>, %arg2: memref<1x8x256xf32, #tpu.memory_space<vmem>>, %arg3: memref<256x768xf32, #tpu.memory_space<vmem>>, %arg4: memref<1x768xf32, #tpu.memory_space<vmem>>, %arg5: memref<256x128xf32, #tpu.memory_space<vmem>>, %arg6: memref<1x128xf32, #tpu.memory_space<vmem>>, %arg7: memref<1x8x128xf32, #tpu.memory_space<vmem>>, %arg8: memref<1x8x128xf32, #tpu.memory_space<vmem>>, %arg9: memref<8x128xf32, #tpu.memory_space<vmem>>, %arg10: memref<8x256xf32, #tpu.memory_space<vmem>>) attributes {dimension_semantics = [#tpu.dimension_semantics<arbitrary>], iteration_bounds = array<i64: 8>, scalar_prefetch = 0 : i64, scratch_operands = 1 : i64, tpu.core_type = #tpu.core_type<tc>, window_params = [{transform_indices = @transform_0, window_bounds = array<i64: 1, 8, 768>}, {transform_indices = @transform_1, window_bounds = array<i64: 1, 8, 256>}, {pipeline_mode = #tpu.pipeline_mode<synchronous>, transform_indices = @transform_2, window_bounds = array<i64: 256, 768>}, {pipeline_mode = #tpu.pipeline_mode<synchronous>, transform_indices = @transform_3, window_bounds = array<i64: 1, 768>}, {pipeline_mode = #tpu.pipeline_mode<synchronous>, transform_indices = @transform_4, window_bounds = array<i64: 256, 128>}, {pipeline_mode = #tpu.pipeline_mode<synchronous>, transform_indices = @transform_5, window_bounds = array<i64: 1, 128>}, {transform_indices = @transform_6, window_bounds = array<i64: 1, 8, 128>}, {transform_indices = @transform_7, window_bounds = array<i64: 1, 8, 128>}, {pipeline_mode = #tpu.pipeline_mode<synchronous>, transform_indices = @transform_8, window_bounds = array<i64: 8, 128>}]} {
    %c0_i32 = arith.constant 0 : i32
    %0 = arith.cmpi eq, %arg0, %c0_i32 : i32
    %1 = arith.extui %0 : i1 to i32
    %c0_i32_0 = arith.constant 0 : i32
    %2 = arith.cmpi ne, %1, %c0_i32_0 : i32
    scf.if %2 {
      %cst_25 = arith.constant 0.000000e+00 : f32
      %57 = vector.broadcast %cst_25 : f32 to vector<8x256xf32>
      %c0_26 = arith.constant 0 : index
      %c0_27 = arith.constant 0 : index
      %58 = vector.load %arg10[%c0_26, %c0_27] : memref<8x256xf32, #tpu.memory_space<vmem>>, vector<8x256xf32>
      tpu.vector_store %arg10[%c0_26, %c0_27], %57 {strides = array<i32>} : memref<8x256xf32, #tpu.memory_space<vmem>>, vector<8x256xf32>,
    } else {
    }
    %c0 = arith.constant 0 : index
    %c0_1 = arith.constant 0 : index
    %3 = vector.load %arg10[%c0, %c0_1] : memref<8x256xf32, #tpu.memory_space<vmem>>, vector<8x256xf32>
    %c0_2 = arith.constant 0 : index
    %c0_3 = arith.constant 0 : index
    %c0_4 = arith.constant 0 : index
    %4 = vector.load %arg1[%c0_2, %c0_3, %c0_4] : memref<1x8x768xf32, #tpu.memory_space<vmem>>, vector<1x8x768xf32>
    %5 = vector.shape_cast %4 : vector<1x8x768xf32> to vector<8x768xf32>
    %c0_5 = arith.constant 0 : index
    %c0_6 = arith.constant 0 : index
    %6 = vector.load %arg3[%c0_5, %c0_6] : memref<256x768xf32, #tpu.memory_space<vmem>>, vector<256x768xf32>
    %cst = arith.constant dense<0.000000e+00> : vector<8x768xf32>
    %7 = tpu.matmul %3, %6, %cst {dimension_numbers = #tpu.dot_dimension_numbers<[1], [0], [0], [1], [0, 0, 1, 1], [], []>} : vector<8x256xf32>, vector<256x768xf32>, vector<8x768xf32> -> vector<8x768xf32>
    %c0_7 = arith.constant 0 : index
    %c0_8 = arith.constant 0 : index
    %8 = vector.load %arg4[%c0_7, %c0_8] : memref<1x768xf32, #tpu.memory_space<vmem>>, vector<1x768xf32>
    %9 = vector.broadcast %8 : vector<1x768xf32> to vector<8x768xf32>
    %10 = arith.addf %7, %9 : vector<8x768xf32>
    %11 = vector.extract_strided_slice %5 {offsets = [0, 0], sizes = [8, 256], strides = [1, 1]} : vector<8x768xf32> to vector<8x256xf32>
    %12 = vector.extract_strided_slice %10 {offsets = [0, 0], sizes = [8, 256], strides = [1, 1]} : vector<8x768xf32> to vector<8x256xf32>
    %13 = arith.addf %11, %12 : vector<8x256xf32>
    %14 = arith.negf %13 : vector<8x256xf32>
    %15 = math.exp %14 : vector<8x256xf32>
    %cst_9 = arith.constant 1.000000e+00 : f32
    %16 = vector.broadcast %cst_9 : f32 to vector<8x256xf32>
    %17 = arith.addf %16, %15 : vector<8x256xf32>
    %18 = arith.divf %16, %17 : vector<8x256xf32>
    %19 = vector.extract_strided_slice %5 {offsets = [0, 256], sizes = [8, 256], strides = [1, 1]} : vector<8x768xf32> to vector<8x256xf32>
    %20 = vector.extract_strided_slice %10 {offsets = [0, 256], sizes = [8, 256], strides = [1, 1]} : vector<8x768xf32> to vector<8x256xf32>
    %21 = arith.addf %19, %20 : vector<8x256xf32>
    %22 = arith.negf %21 : vector<8x256xf32>
    %23 = math.exp %22 : vector<8x256xf32>
    %cst_10 = arith.constant 1.000000e+00 : f32
    %24 = vector.broadcast %cst_10 : f32 to vector<8x256xf32>
    %25 = arith.addf %24, %23 : vector<8x256xf32>
    %26 = arith.divf %24, %25 : vector<8x256xf32>
    %27 = vector.extract_strided_slice %5 {offsets = [0, 512], sizes = [8, 256], strides = [1, 1]} : vector<8x768xf32> to vector<8x256xf32>
    %28 = vector.extract_strided_slice %10 {offsets = [0, 512], sizes = [8, 256], strides = [1, 1]} : vector<8x768xf32> to vector<8x256xf32>
    %29 = arith.mulf %18, %28 : vector<8x256xf32>
    %30 = arith.addf %27, %29 : vector<8x256xf32>
    %31 = math.tanh %30 : vector<8x256xf32>
    %cst_11 = arith.constant 1.000000e+00 : f32
    %32 = vector.broadcast %cst_11 : f32 to vector<8x256xf32>
    %33 = arith.subf %32, %26 : vector<8x256xf32>
    %34 = arith.mulf %33, %31 : vector<8x256xf32>
    %35 = arith.mulf %26, %3 : vector<8x256xf32>
    %36 = arith.addf %34, %35 : vector<8x256xf32>
    %c0_12 = arith.constant 0 : index
    %c0_13 = arith.constant 0 : index
    %c0_14 = arith.constant 0 : index
    %37 = vector.load %arg2[%c0_12, %c0_13, %c0_14] : memref<1x8x256xf32, #tpu.memory_space<vmem>>, vector<1x8x256xf32>
    %38 = vector.shape_cast %37 : vector<1x8x256xf32> to vector<8x256xf32>
    %39 = arith.mulf %38, %36 : vector<8x256xf32>
    %cst_15 = arith.constant 1.000000e+00 : f32
    %40 = vector.broadcast %cst_15 : f32 to vector<8x256xf32>
    %41 = arith.subf %40, %38 : vector<8x256xf32>
    %42 = arith.mulf %41, %3 : vector<8x256xf32>
    %43 = arith.addf %39, %42 : vector<8x256xf32>
    %c0_16 = arith.constant 0 : index
    %c0_17 = arith.constant 0 : index
    %44 = vector.load %arg10[%c0_16, %c0_17] : memref<8x256xf32, #tpu.memory_space<vmem>>, vector<8x256xf32>
    tpu.vector_store %arg10[%c0_16, %c0_17], %43 {strides = array<i32>} : memref<8x256xf32, #tpu.memory_space<vmem>>, vector<8x256xf32>,
    %45 = arith.mulf %43, %38 : vector<8x256xf32>
    %46 = vector.extract_strided_slice %45 {offsets = [0, 0], sizes = [8, 128], strides = [1, 1]} : vector<8x256xf32> to vector<8x128xf32>
    %c0_18 = arith.constant 0 : index
    %c0_19 = arith.constant 0 : index
    %c0_20 = arith.constant 0 : index
    %47 = vector.load %arg7[%c0_18, %c0_19, %c0_20] : memref<1x8x128xf32, #tpu.memory_space<vmem>>, vector<1x8x128xf32>
    %48 = vector.shape_cast %47 : vector<1x8x128xf32> to vector<8x128xf32>
    %49 = vector.shape_cast %46 : vector<8x128xf32> to vector<1x8x128xf32>
    tpu.vector_store %arg7[%c0_18, %c0_19, %c0_20], %49 {strides = array<i32>} : memref<1x8x128xf32, #tpu.memory_space<vmem>>, vector<1x8x128xf32>,
    %50 = vector.extract_strided_slice %45 {offsets = [0, 128], sizes = [8, 128], strides = [1, 1]} : vector<8x256xf32> to vector<8x128xf32>
    %c0_21 = arith.constant 0 : index
    %c0_22 = arith.constant 0 : index
    %c0_23 = arith.constant 0 : index
    %51 = vector.load %arg8[%c0_21, %c0_22, %c0_23] : memref<1x8x128xf32, #tpu.memory_space<vmem>>, vector<1x8x128xf32>
    %52 = vector.shape_cast %51 : vector<1x8x128xf32> to vector<8x128xf32>
    %53 = vector.shape_cast %50 : vector<8x128xf32> to vector<1x8x128xf32>
    tpu.vector_store %arg8[%c0_21, %c0_22, %c0_23], %53 {strides = array<i32>} : memref<1x8x128xf32, #tpu.memory_space<vmem>>, vector<1x8x128xf32>,
    %c7_i32 = arith.constant 7 : i32
    %54 = arith.cmpi eq, %arg0, %c7_i32 : i32
    %55 = arith.extui %54 : i1 to i32
    %c0_i32_24 = arith.constant 0 : i32
    %56 = arith.cmpi ne, %55, %c0_i32_24 : i32
    scf.if %56 {
      %c0_25 = arith.constant 0 : index
      %c0_26 = arith.constant 0 : index
      %57 = vector.load %arg5[%c0_25, %c0_26] : memref<256x128xf32, #tpu.memory_space<vmem>>, vector<256x128xf32>
      %cst_27 = arith.constant dense<0.000000e+00> : vector<8x128xf32>
      %58 = tpu.matmul %43, %57, %cst_27 {dimension_numbers = #tpu.dot_dimension_numbers<[1], [0], [0], [1], [0, 0, 1, 1], [], []>} : vector<8x256xf32>, vector<256x128xf32>, vector<8x128xf32> -> vector<8x128xf32>
      %c0_28 = arith.constant 0 : index
      %c0_29 = arith.constant 0 : index
      %59 = vector.load %arg6[%c0_28, %c0_29] : memref<1x128xf32, #tpu.memory_space<vmem>>, vector<1x128xf32>
      %60 = vector.broadcast %59 : vector<1x128xf32> to vector<8x128xf32>
      %61 = arith.addf %58, %60 : vector<8x128xf32>
      %62 = math.tanh %61 : vector<8x128xf32>
      %c0_30 = arith.constant 0 : index
      %c0_31 = arith.constant 0 : index
      %63 = vector.load %arg9[%c0_30, %c0_31] : memref<8x128xf32, #tpu.memory_space<vmem>>, vector<8x128xf32>
      tpu.vector_store %arg9[%c0_30, %c0_31], %62 {strides = array<i32>} : memref<8x128xf32, #tpu.memory_space<vmem>>, vector<8x128xf32>,
    } else {
    }
    return
  }
  func.func @transform_0(%arg0: i32) -> (i32, i32, i32) {
    %c0_i32 = arith.constant 0 : i32
    %c0_i32_0 = arith.constant 0 : i32
    %c0_i32_1 = arith.constant 0 : i32
    return %arg0, %c0_i32, %c0_i32_0 : i32, i32, i32
  }
  func.func @transform_1(%arg0: i32) -> (i32, i32, i32) {
    %c0_i32 = arith.constant 0 : i32
    %c0_i32_0 = arith.constant 0 : i32
    %c0_i32_1 = arith.constant 0 : i32
    return %arg0, %c0_i32, %c0_i32_0 : i32, i32, i32
  }
  func.func @transform_2(%arg0: i32) -> (i32, i32) {
    %c0_i32 = arith.constant 0 : i32
    %c0_i32_0 = arith.constant 0 : i32
    %c0_i32_1 = arith.constant 0 : i32
    return %c0_i32, %c0_i32_0 : i32, i32
  }
  func.func @transform_3(%arg0: i32) -> (i32, i32) {
    %c0_i32 = arith.constant 0 : i32
    %c0_i32_0 = arith.constant 0 : i32
    %c0_i32_1 = arith.constant 0 : i32
    return %c0_i32, %c0_i32_0 : i32, i32
  }
  func.func @transform_4(%arg0: i32) -> (i32, i32) {
    %c0_i32 = arith.constant 0 : i32
    %c0_i32_0 = arith.constant 0 : i32
    %c0_i32_1 = arith.constant 0 : i32
    return %c0_i32, %c0_i32_0 : i32, i32
  }
  func.func @transform_5(%arg0: i32) -> (i32, i32) {
    %c0_i32 = arith.constant 0 : i32
    %c0_i32_0 = arith.constant 0 : i32
    %c0_i32_1 = arith.constant 0 : i32
    return %c0_i32, %c0_i32_0 : i32, i32
  }
  func.func @transform_6(%arg0: i32) -> (i32, i32, i32) {
    %c0_i32 = arith.constant 0 : i32
    %c0_i32_0 = arith.constant 0 : i32
    %c0_i32_1 = arith.constant 0 : i32
    return %arg0, %c0_i32, %c0_i32_0 : i32, i32, i32
  }
  func.func @transform_7(%arg0: i32) -> (i32, i32, i32) {
    %c7_i32 = arith.constant 7 : i32
    %0 = arith.subi %c7_i32, %arg0 : i32
    %c0_i32 = arith.constant 0 : i32
    %c0_i32_0 = arith.constant 0 : i32
    %c0_i32_1 = arith.constant 0 : i32
    return %0, %c0_i32, %c0_i32_0 : i32, i32, i32
  }
  func.func @transform_8(%arg0: i32) -> (i32, i32) {
    %c0_i32 = arith.constant 0 : i32
    %c0_i32_0 = arith.constant 0 : i32
    %c0_i32_1 = arith.constant 0 : i32
    return %c0_i32, %c0_i32_0 : i32, i32
  }
}

</mosaic_0001>

<llo_original>
// kernel: tpu_custom_call.1
$region0: #{tpu_custom_call.1}
  #allocation0 [shape = 'u32[]', space=smem, size = 0x4, offset = 0x4, fixed_abs, tag = 'smem constant byte address 0x4 - core index']
  #allocation1 [shape = 'u32[144,128]{1,0:T(1,128)}', space=vmem, size = 0x12000, scoped, tag = 'internal scratch']
  #allocation2 [shape = 'f32[8,256]{1,0:T(8,128)}', space=vmem, size = 0x2000, scoped, tag = 'scratch operand']
  %s0 = inlined_call_operand.hbm [shape: f32[8,8,768], index: 0, kind: input, shape index: {}]
  %s1 = inlined_call_operand.hbm [shape: f32[8,8,256], index: 1, kind: input, shape index: {}]
  %s2 = inlined_call_operand.hbm [shape: f32[256,768], index: 2, kind: input, shape index: {}]
  %s3 = inlined_call_operand.vmem [shape: f32[1,768], index: 3, kind: input, shape index: {}]
  %s4 = inlined_call_operand.hbm [shape: f32[256,128], index: 4, kind: input, shape index: {}]
  %s5 = inlined_call_operand.vmem [shape: f32[1,128], index: 5, kind: input, shape index: {}]
  %s6 = inlined_call_operand.hbm [shape: f32[8,8,128], index: 6, kind: output, shape index: {0}]
  %s7 = inlined_call_operand.hbm [shape: f32[8,8,128], index: 7, kind: output, shape index: {1}]
  %s8 = inlined_call_operand.hbm [shape: f32[8,128], index: 8, kind: output, shape index: {2}]
  %9 = xla_tuple %s6, %s7, %s8
  %s10 = sld [smem:[#allocation0]]
  $region97: #{tpu_custom_call.1} parent=0
    _
  %s12 = ssub.s32 1, %s10
  %s13 = scalar_select 0, %s12, %s10
  $region1: #{tpu_custom_call.1} parent=0
    #allocation3 [shape = 'u8[49152]{0}', space=vmem, size = 0xc000, scoped, tag = 'input window, operand 0']
    #allocation4 [shape = 's32[2]{0}', space=sflag, size = 0x8, scoped, tag = 'scoped memory for tpu_custom_call.1']
    #allocation5 [shape = 's32[2]{0}', space=sflag, size = 0x8, scoped, tag = 'scoped memory for tpu_custom_call.1']
    #allocation6 [shape = 'u8[16384]{0}', space=vmem, size = 0x4000, scoped, tag = 'input window, operand 1']
    #allocation7 [shape = 's32[2]{0}', space=sflag, size = 0x8, scoped, tag = 'scoped memory for tpu_custom_call.1']
    #allocation8 [shape = 'u8[786432]{0}', space=vmem, size = 0xc0000, scoped, tag = 'input window, operand 2, single buffered']
    #allocation9 [shape = 'u8[131072]{0}', space=vmem, size = 0x20000, scoped, tag = 'input window, operand 4, single buffered']
    #allocation10 [shape = 's32[1]{0}', space=sflag, size = 0x4, scoped, tag = 'scoped memory for tpu_custom_call.1']
    #allocation11 [shape = 'u8[8192]{0}', space=vmem, size = 0x2000, scoped, tag = 'output window, operand 0']
    #allocation12 [shape = 'u8[8192]{0}', space=vmem, size = 0x2000, scoped, tag = 'output window, operand 1']
    #allocation13 [shape = 's32[2]{0}', space=sflag, size = 0x8, scoped, tag = 'scoped memory for tpu_custom_call.1']
    #allocation14 [shape = 'u8[4096]{0}', space=vmem, size = 0x1000, scoped, tag = 'output window, operand 2, single buffered']
    %14 = vsyncpa [#allocation4], 0
    %s15 = scalar_lea.sflag [#allocation4], 1
    %16 = vsyncpa %s15, 0
    %17 = vsyncpa [#allocation7], 0
    %s18 = scalar_lea.sflag [#allocation7], 1
    %19 = vsyncpa %s18, 0
    %20 = vsyncpa [#allocation10], 0
    %21 = vsyncpa [#allocation5], 0
    %s22 = scalar_lea.sflag [#allocation5], 1
    %23 = vsyncpa %s22, 0
    %24 = vsyncpa [#allocation13], 0
    %s25 = scalar_lea.sflag [#allocation13], 1
    %26 = vsyncpa %s25, 0
    loop: start=0, step=1, limit=10
    $region2: #{tpu_custom_call.1} parent=1 // loop_pre_header
      _
    $region3: #{tpu_custom_call.1} parent=1 // loop_header
      %s28 = sphi 0, %s32
      %p29 = scmp.ge.s32.totalorder %s28, 10
      %s38 = sphi 0, %s40
      %s41 = sphi 0, %s38
      %s42 = sphi 0, %s41
      %s58 = sphi 0, %s42
      %s64 = sphi 0, %s66
      %s67 = sphi 0, %s64
      %s68 = sphi 0, %s67
      %s84 = sphi 0, %s68
      %s88 = sphi 0, %s88
      %s90 = sphi 0, %s88
      %s91 = sphi 0, %s90
      %s105 = sphi 0, %s91
      %s109 = sphi 0, %s109
      %s111 = sphi 0, %s109
      %s112 = sphi 0, %s111
      %s126 = sphi 0, %s112
      %s130 = sphi 0, %s130
      %s132 = sphi 0, %s130
      %s133 = sphi 0, %s132
      %s147 = sphi 0, %s133
      %s151 = sphi 0, %s151
      %s153 = sphi 0, %s151
      %s154 = sphi 0, %s153
      %s168 = sphi 0, %s154
      %s174 = sphi 0, %s176
      %s177 = sphi 0, %s174
      %s178 = sphi 0, %s177
      %s194 = sphi 0, %s178
      %s202 = sphi 0, %s204
      %s205 = sphi 0, %s202
      %s206 = sphi 0, %s205
      %s222 = sphi 0, %s206
      %s226 = sphi 0, %s226
      %s228 = sphi 0, %s226
      %s229 = sphi 0, %s228
      %s243 = sphi 0, %s229
    $region4: #{tpu_custom_call.1} parent=1 // loop_header_branch
      %31 = sbr.rel (%p29) target = $region8
    $region5: #{tpu_custom_call.1} parent=1 // loop_body
      %s33 = ssub.s32 %s28, 1
      %s34 = ssub.s32 %s28, 2
      %s35 = sadd.s32 %s28, 1
      %s36 = ssub.s32 %s28, %s35
      %p37 = scmp.eq.s32.totalorder %s36, 0
      %s39 = sadd.s32 %s38, 1
      %s40 = scalar_select %p37, %s38, %s39
      %p43 = pneg %p37
      %p44 = scmp.eq.s32.totalorder %s28, 7
      %p45 = por %p43, %p44
      %p46 = scmp.ne.s32.totalorder %s38, %s41
      %p47 = scmp.eq.s32.totalorder %s28, 0
      %p48 = por %p46, %p47
      %p49 = scmp.ne.s32.totalorder %s38, %s41
      %p50 = scmp.eq.s32.totalorder %s33, 7
      %p51 = por %p49, %p50
      %p52 = scmp.ne.s32.totalorder %s41, %s42
      %p53 = scmp.eq.s32.totalorder %s33, 0
      %p54 = por %p52, %p53
      %p55 = scmp.ne.s32.totalorder %s41, %s42
      %p56 = scmp.eq.s32.totalorder %s34, 7
      %p57 = por %p55, %p56
      %p59 = scmp.ne.s32.totalorder %s42, %s58
      %p60 = scmp.eq.s32.totalorder %s34, 0
      %p61 = por %p59, %p60
      %s62 = ssub.s32 %s28, %s35
      %p63 = scmp.eq.s32.totalorder %s62, 0
      %s65 = sadd.s32 %s64, 1
      %s66 = scalar_select %p63, %s64, %s65
      %p69 = pneg %p63
      %p70 = scmp.eq.s32.totalorder %s28, 7
      %p71 = por %p69, %p70
      %p72 = scmp.ne.s32.totalorder %s64, %s67
      %p73 = scmp.eq.s32.totalorder %s28, 0
      %p74 = por %p72, %p73
      %p75 = scmp.ne.s32.totalorder %s64, %s67
      %p76 = scmp.eq.s32.totalorder %s33, 7
      %p77 = por %p75, %p76
      %p78 = scmp.ne.s32.totalorder %s67, %s68
      %p79 = scmp.eq.s32.totalorder %s33, 0
      %p80 = por %p78, %p79
      %p81 = scmp.ne.s32.totalorder %s67, %s68
      %p82 = scmp.eq.s32.totalorder %s34, 7
      %p83 = por %p81, %p82
      %p85 = scmp.ne.s32.totalorder %s68, %s84
      %p86 = scmp.eq.s32.totalorder %s34, 0
      %p87 = por %p85, %p86
      %s89 = sadd.s32 %s88, 1
      %p92 = scmp.eq.s32.totalorder %s28, 7
      %p93 = scmp.ne.s32.totalorder %s88, %s90
      %p94 = scmp.eq.s32.totalorder %s28, 0
      %p95 = por %p93, %p94
      %p96 = scmp.ne.s32.totalorder %s88, %s90
      %p97 = scmp.eq.s32.totalorder %s33, 7
      %p98 = por %p96, %p97
      %p99 = scmp.ne.s32.totalorder %s90, %s91
      %p100 = scmp.eq.s32.totalorder %s33, 0
      %p101 = por %p99, %p100
      %p102 = scmp.ne.s32.totalorder %s90, %s91
      %p103 = scmp.eq.s32.totalorder %s34, 7
      %p104 = por %p102, %p103
      %p106 = scmp.ne.s32.totalorder %s91, %s105
      %p107 = scmp.eq.s32.totalorder %s34, 0
      %p108 = por %p106, %p107
      %s110 = sadd.s32 %s109, 1
      %p113 = scmp.eq.s32.totalorder %s28, 7
      %p114 = scmp.ne.s32.totalorder %s109, %s111
      %p115 = scmp.eq.s32.totalorder %s28, 0
      %p116 = por %p114, %p115
      %p117 = scmp.ne.s32.totalorder %s109, %s111
      %p118 = scmp.eq.s32.totalorder %s33, 7
      %p119 = por %p117, %p118
      %p120 = scmp.ne.s32.totalorder %s111, %s112
      %p121 = scmp.eq.s32.totalorder %s33, 0
      %p122 = por %p120, %p121
      %p123 = scmp.ne.s32.totalorder %s111, %s112
      %p124 = scmp.eq.s32.totalorder %s34, 7
      %p125 = por %p123, %p124
      %p127 = scmp.ne.s32.totalorder %s112, %s126
      %p128 = scmp.eq.s32.totalorder %s34, 0
      %p129 = por %p127, %p128
      %s131 = sadd.s32 %s130, 1
      %p134 = scmp.eq.s32.totalorder %s28, 7
      %p135 = scmp.ne.s32.totalorder %s130, %s132
      %p136 = scmp.eq.s32.totalorder %s28, 0
      %p137 = por %p135, %p136
      %p138 = scmp.ne.s32.totalorder %s130, %s132
      %p139 = scmp.eq.s32.totalorder %s33, 7
      %p140 = por %p138, %p139
      %p141 = scmp.ne.s32.totalorder %s132, %s133
      %p142 = scmp.eq.s32.totalorder %s33, 0
      %p143 = por %p141, %p142
      %p144 = scmp.ne.s32.totalorder %s132, %s133
      %p145 = scmp.eq.s32.totalorder %s34, 7
      %p146 = por %p144, %p145
      %p148 = scmp.ne.s32.totalorder %s133, %s147
      %p149 = scmp.eq.s32.totalorder %s34, 0
      %p150 = por %p148, %p149
      %s152 = sadd.s32 %s151, 1
      %p155 = scmp.eq.s32.totalorder %s28, 7
      %p156 = scmp.ne.s32.totalorder %s151, %s153
      %p157 = scmp.eq.s32.totalorder %s28, 0
      %p158 = por %p156, %p157
      %p159 = scmp.ne.s32.totalorder %s151, %s153
      %p160 = scmp.eq.s32.totalorder %s33, 7
      %p161 = por %p159, %p160
      %p162 = scmp.ne.s32.totalorder %s153, %s154
      %p163 = scmp.eq.s32.totalorder %s33, 0
      %p164 = por %p162, %p163
      %p165 = scmp.ne.s32.totalorder %s153, %s154
      %p166 = scmp.eq.s32.totalorder %s34, 7
      %p167 = por %p165, %p166
      %p169 = scmp.ne.s32.totalorder %s154, %s168
      %p170 = scmp.eq.s32.totalorder %s34, 0
      %p171 = por %p169, %p170
      %s172 = ssub.s32 %s28, %s35
      %p173 = scmp.eq.s32.totalorder %s172, 0
      %s175 = sadd.s32 %s174, 1
      %s176 = scalar_select %p173, %s174, %s175
      %p179 = pneg %p173
      %p180 = scmp.eq.s32.totalorder %s28, 7
      %p181 = por %p179, %p180
      %p182 = scmp.ne.s32.totalorder %s174, %s177
      %p183 = scmp.eq.s32.totalorder %s28, 0
      %p184 = por %p182, %p183
      %p185 = scmp.ne.s32.totalorder %s174, %s177
      %p186 = scmp.eq.s32.totalorder %s33, 7
      %p187 = por %p185, %p186
      %p188 = scmp.ne.s32.totalorder %s177, %s178
      %p189 = scmp.eq.s32.totalorder %s33, 0
      %p190 = por %p188, %p189
      %p191 = scmp.ne.s32.totalorder %s177, %s178
      %p192 = scmp.eq.s32.totalorder %s34, 7
      %p193 = por %p191, %p192
      %p195 = scmp.ne.s32.totalorder %s178, %s194
      %p196 = scmp.eq.s32.totalorder %s34, 0
      %p197 = por %p195, %p196
      %s198 = ssub.s32 7, %s28
      %s199 = ssub.s32 7, %s35
      %s200 = ssub.s32 %s198, %s199
      %p201 = scmp.eq.s32.totalorder %s200, 0
      %s203 = sadd.s32 %s202, 1
      %s204 = scalar_select %p201, %s202, %s203
      %p207 = pneg %p201
      %p208 = scmp.eq.s32.totalorder %s28, 7
      %p209 = por %p207, %p208
      %p210 = scmp.ne.s32.totalorder %s202, %s205
      %p211 = scmp.eq.s32.totalorder %s28, 0
      %p212 = por %p210, %p211
      %p213 = scmp.ne.s32.totalorder %s202, %s205
      %p214 = scmp.eq.s32.totalorder %s33, 7
      %p215 = por %p213, %p214
      %p216 = scmp.ne.s32.totalorder %s205, %s206
      %p217 = scmp.eq.s32.totalorder %s33, 0
      %p218 = por %p216, %p217
      %p219 = scmp.ne.s32.totalorder %s205, %s206
      %p220 = scmp.eq.s32.totalorder %s34, 7
      %p221 = por %p219, %p220
      %p223 = scmp.ne.s32.totalorder %s206, %s222
      %p224 = scmp.eq.s32.totalorder %s34, 0
      %p225 = por %p223, %p224
      %s227 = sadd.s32 %s226, 1
      %p230 = scmp.eq.s32.totalorder %s28, 7
      %p231 = scmp.ne.s32.totalorder %s226, %s228
      %p232 = scmp.eq.s32.totalorder %s28, 0
      %p233 = por %p231, %p232
      %p234 = scmp.ne.s32.totalorder %s226, %s228
      %p235 = scmp.eq.s32.totalorder %s33, 7
      %p236 = por %p234, %p235
      %p237 = scmp.ne.s32.totalorder %s228, %s229
      %p238 = scmp.eq.s32.totalorder %s33, 0
      %p239 = por %p237, %p238
      %p240 = scmp.ne.s32.totalorder %s228, %s229
      %p241 = scmp.eq.s32.totalorder %s34, 7
      %p242 = por %p240, %p241
      %p244 = scmp.ne.s32.totalorder %s229, %s243
      %p245 = scmp.eq.s32.totalorder %s34, 0
      %p246 = por %p244, %p245
      %p247 = scmp.le.s32.totalorder 1, %s28
      %p248 = scmp.lt.s32.totalorder %s28, 9
      %p249 = pnand %p247, %p248
      %p250 = pneg %p249
      // Predicated region
      $region9: #{tpu_custom_call.1} parent=5 // pred_check
        _
      $region10: #{tpu_custom_call.1} parent=5 // pred_check_branch
        %252 = sbr.rel (%p249) target = $region12
      $region11: #{tpu_custom_call.1} parent=5 // pred_region
        %s253 = ssub.s32 %s28, 1
        // Predicated region
        $region13: #{tpu_custom_call.1} parent=11 // pred_check
          %p254 = pneg %p101
        $region14: #{tpu_custom_call.1} parent=11 // pred_check_branch
          %256 = sbr.rel (%p254) target = $region16
        $region15: #{tpu_custom_call.1} parent=11 // pred_region
          %s258 = ssub.s32 24576, 24576
          %259 = vsyncadd [#allocation7], %s258
          %s260 = sshll.u32 [#allocation8], 4
          %s261 = int_to_ptr.vmem [resolvable:$true] %s260
          %266 = dma.hbm_to_vmem [thread:$0]  %s2, 24576, %s261, [#allocation7], 768, 768, 48
        $region16: #{tpu_custom_call.1} parent=11 // pred_fallthru
          _
        // Predicated region
        $region17: #{tpu_custom_call.1} parent=11 // pred_check
          %p267 = pneg %p122
        $region18: #{tpu_custom_call.1} parent=11 // pred_check_branch
          %269 = sbr.rel (%p267) target = $region20
        $region19: #{tpu_custom_call.1} parent=11 // pred_region
          _
        $region20: #{tpu_custom_call.1} parent=11 // pred_fallthru
          _
        // Predicated region
        $region21: #{tpu_custom_call.1} parent=11 // pred_check
          %p270 = pneg %p143
        $region22: #{tpu_custom_call.1} parent=11 // pred_check_branch
          %272 = sbr.rel (%p270) target = $region24
        $region23: #{tpu_custom_call.1} parent=11 // pred_region
          %s274 = ssub.s32 4096, 4096
          %275 = vsyncadd [#allocation10], %s274
          %s276 = sshll.u32 [#allocation9], 4
          %s277 = int_to_ptr.vmem [resolvable:$true] %s276
          %282 = dma.hbm_to_vmem [thread:$0]  %s4, 4096, %s277, [#allocation10], 128, 128, 8
        $region24: #{tpu_custom_call.1} parent=11 // pred_fallthru
          _
        // Predicated region
        $region25: #{tpu_custom_call.1} parent=11 // pred_check
          %p283 = pneg %p164
        $region26: #{tpu_custom_call.1} parent=11 // pred_check_branch
          %285 = sbr.rel (%p283) target = $region28
        $region27: #{tpu_custom_call.1} parent=11 // pred_region
          _
        $region28: #{tpu_custom_call.1} parent=11 // pred_fallthru
          _
      $region12: #{tpu_custom_call.1} parent=5 // pred_fallthru
        _
      %p286 = scmp.lt.s32.totalorder %s28, 8
      // Predicated region
      $region29: #{tpu_custom_call.1} parent=5 // pred_check
        %p287 = pneg %p286
      $region30: #{tpu_custom_call.1} parent=5 // pred_check_branch
        %289 = sbr.rel (%p287) target = $region32
      $region31: #{tpu_custom_call.1} parent=5 // pred_region
        // Predicated region
        $region33: #{tpu_custom_call.1} parent=31 // pred_check
          %p290 = pneg %p48
        $region34: #{tpu_custom_call.1} parent=31 // pred_check_branch
          %292 = sbr.rel (%p290) target = $region36
        $region35: #{tpu_custom_call.1} parent=31 // pred_region
          %s293 = sand.u32 %s38, 1
          %s294 = scalar_lea.sflag [#allocation4], %s293
          %s295 = sand.u32 %s38, 1
          %s296 = smul.addr %s295, 48
          %s297 = scalar_lea.vmem [#allocation3], %s296
          %s299 = ssub.s32 768, 768
          %300 = vsyncadd %s294, %s299
          %s301 = smul.addr %s28, 6
          %s302 = smul.addr %s301, 128
          %s303 = scalar_lea.hbm %s0, %s302
          %s305 = sshll.u32 %s297, 4
          %s306 = int_to_ptr.vmem [resolvable:$true] %s305
          %308 = dma.hbm_to_vmem [thread:$0]  %s303, 768, %s306, %s294
        $region36: #{tpu_custom_call.1} parent=31 // pred_fallthru
          _
        // Predicated region
        $region37: #{tpu_custom_call.1} parent=31 // pred_check
          %p309 = pneg %p74
        $region38: #{tpu_custom_call.1} parent=31 // pred_check_branch
          %311 = sbr.rel (%p309) target = $region40
        $region39: #{tpu_custom_call.1} parent=31 // pred_region
          %s312 = sand.u32 %s28, 1
          %s313 = scalar_lea.sflag [#allocation7], %s312
          %s314 = sand.u32 %s64, 1
          %s315 = smul.addr %s314, 16
          %s316 = scalar_lea.vmem [#allocation6], %s315
          %s318 = ssub.s32 256, 256
          %319 = vsyncadd %s313, %s318
          %s320 = smul.addr %s28, 2
          %s321 = smul.addr %s320, 128
          %s322 = scalar_lea.hbm %s1, %s321
          %s324 = sshll.u32 %s316, 4
          %s325 = int_to_ptr.vmem [resolvable:$true] %s324
          %327 = dma.hbm_to_vmem [thread:$0]  %s322, 256, %s325, %s313
        $region40: #{tpu_custom_call.1} parent=31 // pred_fallthru
          _
      $region32: #{tpu_custom_call.1} parent=5 // pred_fallthru
        _
      %p328 = scmp.le.s32.totalorder 1, %s28
      %p329 = scmp.lt.s32.totalorder %s28, 9
      %p330 = pnand %p328, %p329
      %p331 = pneg %p330
      // Predicated region
      $region41: #{tpu_custom_call.1} parent=5 // pred_check
        _
      $region42: #{tpu_custom_call.1} parent=5 // pred_check_branch
        %333 = sbr.rel (%p330) target = $region44
      $region43: #{tpu_custom_call.1} parent=5 // pred_region
        %s334 = ssub.s32 %s28, 1
        %s335 = sand.u32 %s41, 1
        %s336 = scalar_lea.sflag [#allocation4], %s335
        %s337 = sand.u32 %s41, 1
        %s338 = smul.addr %s337, 48
        %s339 = scalar_lea.vmem [#allocation3], %s338
        // Predicated region
        $region45: #{tpu_custom_call.1} parent=43 // pred_check
          %p340 = pneg %p54
        $region46: #{tpu_custom_call.1} parent=43 // pred_check_branch
          %342 = sbr.rel (%p340) target = $region48
        $region47: #{tpu_custom_call.1} parent=43 // pred_region
          %343 = dma.done %s336, 768
        $region48: #{tpu_custom_call.1} parent=43 // pred_fallthru
          _
        %s344 = sand.u32 %s33, 1
        %s345 = scalar_lea.sflag [#allocation7], %s344
        %s346 = sand.u32 %s67, 1
        %s347 = smul.addr %s346, 16
        %s348 = scalar_lea.vmem [#allocation6], %s347
        // Predicated region
        $region49: #{tpu_custom_call.1} parent=43 // pred_check
          %p349 = pneg %p80
        $region50: #{tpu_custom_call.1} parent=43 // pred_check_branch
          %351 = sbr.rel (%p349) target = $region52
        $region51: #{tpu_custom_call.1} parent=43 // pred_region
          %352 = dma.done %s345, 256
        $region52: #{tpu_custom_call.1} parent=43 // pred_fallthru
          _
        // Predicated region
        $region53: #{tpu_custom_call.1} parent=43 // pred_check
          %p353 = pneg %p101
        $region54: #{tpu_custom_call.1} parent=43 // pred_check_branch
          %355 = sbr.rel (%p353) target = $region56
        $region55: #{tpu_custom_call.1} parent=43 // pred_region
          %356 = dma.done [#allocation7], 24576
        $region56: #{tpu_custom_call.1} parent=43 // pred_fallthru
          _
        // Predicated region
        $region57: #{tpu_custom_call.1} parent=43 // pred_check
          %p357 = pneg %p143
        $region58: #{tpu_custom_call.1} parent=43 // pred_check_branch
          %359 = sbr.rel (%p357) target = $region60
        $region59: #{tpu_custom_call.1} parent=43 // pred_region
          %360 = dma.done [#allocation10], 4096
        $region60: #{tpu_custom_call.1} parent=43 // pred_fallthru
          _
        %s361 = sand.u32 %s41, 1
        %s362 = scalar_lea.sflag [#allocation4], %s361
        %s363 = sand.u32 %s41, 1
        %s364 = smul.addr %s363, 48
        %s365 = scalar_lea.vmem [#allocation3], %s364
        %p366 = pneg %p54
        %p367 = pneg %p51
        %s368 = sand.u32 %s33, 1
        %s369 = scalar_lea.sflag [#allocation7], %s368
        %s370 = sand.u32 %s67, 1
        %s371 = smul.addr %s370, 16
        %s372 = scalar_lea.vmem [#allocation6], %s371
        %p373 = pneg %p80
        %p374 = pneg %p77
        %p375 = pneg %p101
        %p376 = pneg %p98
        %p377 = pneg %p122
        %p378 = pneg %p119
        %p379 = pneg %p143
        %p380 = pneg %p140
        %p381 = pneg %p164
        %p382 = pneg %p161
        %p383 = pneg %p190
        %p384 = pneg %p187
        %s385 = sand.u32 %s177, 1
        %s386 = scalar_lea.sflag [#allocation5], %s385
        %s387 = sand.u32 %s177, 1
        %s388 = smul.addr %s387, 8
        %s389 = scalar_lea.vmem [#allocation11], %s388
        %p390 = pneg %p218
        %p391 = pneg %p215
        %s392 = sand.u32 %s33, 1
        %s393 = scalar_lea.sflag [#allocation13], %s392
        %s394 = sand.u32 %s205, 1
        %s395 = smul.addr %s394, 8
        %s396 = scalar_lea.vmem [#allocation12], %s395
        %p397 = pneg %p239
        %p398 = pneg %p236
        %s399 = ssub.s32 7, %s33
        %p400 = scmp.eq.s32.totalorder %s33, 0
        // Predicated region
        $region61: #{tpu_custom_call.1} parent=43 // pred_check
          %p401 = pneg %p400
        $region62: #{tpu_custom_call.1} parent=43 // pred_check_branch
          %403 = sbr.rel (%p401) target = $region64
        $region63: #{tpu_custom_call.1} parent=43 // pred_region
          %404 = vst [vmem:[#allocation2] sm:$0xff] 0.0
          %405 = vst [vmem:[#allocation2 + $0x8] sm:$0xff] 0.0
        $region64: #{tpu_custom_call.1} parent=43 // pred_fallthru
          _
        %v406 = vld [vmem:[#allocation2] sm:$0xff]
        %v407 = vld [vmem:[#allocation2 + $0x8] sm:$0xff]
        %v408 = vld [vmem:[%s339] sm:$0xff]
        %v409 = vld [vmem:[%s339 + $0x8] sm:$0xff]
        %v410 = vld [vmem:[%s339 + $0x10] sm:$0xff]
        %v411 = vld [vmem:[%s339 + $0x18] sm:$0xff]
        %v412 = vld [vmem:[%s339 + $0x20] sm:$0xff]
        %v413 = vld [vmem:[%s339 + $0x28] sm:$0xff]
        %v414 = vld [vmem:[#allocation8] sm:$0xff]
        %v415 = vld [vmem:[#allocation8 + $0x8] sm:$0xff]
        %v416 = vld [vmem:[#allocation8 + $0x10] sm:$0xff]
        %v417 = vld [vmem:[#allocation8 + $0x18] sm:$0xff]
        %v418 = vld [vmem:[#allocation8 + $0x20] sm:$0xff]
        %v419 = vld [vmem:[#allocation8 + $0x28] sm:$0xff]
        %v420 = vld [vmem:[#allocation8 + $0x30] sm:$0xff]
        %v421 = vld [vmem:[#allocation8 + $0x38] sm:$0xff]
        %v422 = vld [vmem:[#allocation8 + $0x40] sm:$0xff]
        %v423 = vld [vmem:[#allocation8 + $0x48] sm:$0xff]
        %v424 = vld [vmem:[#allocation8 + $0x50] sm:$0xff]
        %v425 = vld [vmem:[#allocation8 + $0x58] sm:$0xff]
        %v426 = vld [vmem:[#allocation8 + $0x60] sm:$0xff]
        %v427 = vld [vmem:[#allocation8 + $0x68] sm:$0xff]
        %v428 = vld [vmem:[#allocation8 + $0x70] sm:$0xff]
        %v429 = vld [vmem:[#allocation8 + $0x78] sm:$0xff]
        %v430 = vld [vmem:[#allocation8 + $0x80] sm:$0xff]
        %v431 = vld [vmem:[#allocation8 + $0x88] sm:$0xff]
        %v432 = vld [vmem:[#allocation8 + $0x90] sm:$0xff]
        %v433 = vld [vmem:[#allocation8 + $0x98] sm:$0xff]
        %v434 = vld [vmem:[#allocation8 + $0xa0] sm:$0xff]
        %v435 = vld [vmem:[#allocation8 + $0xa8] sm:$0xff]
        %v436 = vld [vmem:[#allocation8 + $0xb0] sm:$0xff]
        %v437 = vld [vmem:[#allocation8 + $0xb8] sm:$0xff]
        %v438 = vld [vmem:[#allocation8 + $0xc0] sm:$0xff]
        %v439 = vld [vmem:[#allocation8 + $0xc8] sm:$0xff]
        %v440 = vld [vmem:[#allocation8 + $0xd0] sm:$0xff]
        %v441 = vld [vmem:[#allocation8 + $0xd8] sm:$0xff]
        %v442 = vld [vmem:[#allocation8 + $0xe0] sm:$0xff]
        %v443 = vld [vmem:[#allocation8 + $0xe8] sm:$0xff]
        %v444 = vld [vmem:[#allocation8 + $0xf0] sm:$0xff]
        %v445 = vld [vmem:[#allocation8 + $0xf8] sm:$0xff]
        %v446 = vld [vmem:[#allocation8 + $0x100] sm:$0xff]
        %v447 = vld [vmem:[#allocation8 + $0x108] sm:$0xff]
        %v448 = vld [vmem:[#allocation8 + $0x110] sm:$0xff]
        %v449 = vld [vmem:[#allocation8 + $0x118] sm:$0xff]
        %v450 = vld [vmem:[#allocation8 + $0x120] sm:$0xff]
        %v451 = vld [vmem:[#allocation8 + $0x128] sm:$0xff]
        %v452 = vld [vmem:[#allocation8 + $0x130] sm:$0xff]
        %v453 = vld [vmem:[#allocation8 + $0x138] sm:$0xff]
        %v454 = vld [vmem:[#allocation8 + $0x140] sm:$0xff]
        %v455 = vld [vmem:[#allocation8 + $0x148] sm:$0xff]
        %v456 = vld [vmem:[#allocation8 + $0x150] sm:$0xff]
        %v457 = vld [vmem:[#allocation8 + $0x158] sm:$0xff]
        %v458 = vld [vmem:[#allocation8 + $0x160] sm:$0xff]
        %v459 = vld [vmem:[#allocation8 + $0x168] sm:$0xff]
        %v460 = vld [vmem:[#allocation8 + $0x170] sm:$0xff]
        %v461 = vld [vmem:[#allocation8 + $0x178] sm:$0xff]
        %v462 = vld [vmem:[#allocation8 + $0x180] sm:$0xff]
        %v463 = vld [vmem:[#allocation8 + $0x188] sm:$0xff]
        %v464 = vld [vmem:[#allocation8 + $0x190] sm:$0xff]
        %v465 = vld [vmem:[#allocation8 + $0x198] sm:$0xff]
        %v466 = vld [vmem:[#allocation8 + $0x1a0] sm:$0xff]
        %v467 = vld [vmem:[#allocation8 + $0x1a8] sm:$0xff]
        %v468 = vld [vmem:[#allocation8 + $0x1b0] sm:$0xff]
        %v469 = vld [vmem:[#allocation8 + $0x1b8] sm:$0xff]
        %v470 = vld [vmem:[#allocation8 + $0x1c0] sm:$0xff]
        %v471 = vld [vmem:[#allocation8 + $0x1c8] sm:$0xff]
        %v472 = vld [vmem:[#allocation8 + $0x1d0] sm:$0xff]
        %v473 = vld [vmem:[#allocation8 + $0x1d8] sm:$0xff]
        %v474 = vld [vmem:[#allocation8 + $0x1e0] sm:$0xff]
        %v475 = vld [vmem:[#allocation8 + $0x1e8] sm:$0xff]
        %v476 = vld [vmem:[#allocation8 + $0x1f0] sm:$0xff]
        %v477 = vld [vmem:[#allocation8 + $0x1f8] sm:$0xff]
        %v478 = vld [vmem:[#allocation8 + $0x200] sm:$0xff]
        %v479 = vld [vmem:[#allocation8 + $0x208] sm:$0xff]
        %v480 = vld [vmem:[#allocation8 + $0x210] sm:$0xff]
        %v481 = vld [vmem:[#allocation8 + $0x218] sm:$0xff]
        %v482 = vld [vmem:[#allocation8 + $0x220] sm:$0xff]
        %v483 = vld [vmem:[#allocation8 + $0x228] sm:$0xff]
        %v484 = vld [vmem:[#allocation8 + $0x230] sm:$0xff]
        %v485 = vld [vmem:[#allocation8 + $0x238] sm:$0xff]
        %v486 = vld [vmem:[#allocation8 + $0x240] sm:$0xff]
        %v487 = vld [vmem:[#allocation8 + $0x248] sm:$0xff]
        %v488 = vld [vmem:[#allocation8 + $0x250] sm:$0xff]
        %v489 = vld [vmem:[#allocation8 + $0x258] sm:$0xff]
        %v490 = vld [vmem:[#allocation8 + $0x260] sm:$0xff]
        %v491 = vld [vmem:[#allocation8 + $0x268] sm:$0xff]
        %v492 = vld [vmem:[#allocation8 + $0x270] sm:$0xff]
        %v493 = vld [vmem:[#allocation8 + $0x278] sm:$0xff]
        %v494 = vld [vmem:[#allocation8 + $0x280] sm:$0xff]
        %v495 = vld [vmem:[#allocation8 + $0x288] sm:$0xff]
        %v496 = vld [vmem:[#allocation8 + $0x290] sm:$0xff]
        %v497 = vld [vmem:[#allocation8 + $0x298] sm:$0xff]
        %v498 = vld [vmem:[#allocation8 + $0x2a0] sm:$0xff]
        %v499 = vld [vmem:[#allocation8 + $0x2a8] sm:$0xff]
        %v500 = vld [vmem:[#allocation8 + $0x2b0] sm:$0xff]
        %v501 = vld [vmem:[#allocation8 + $0x2b8] sm:$0xff]
        %v502 = vld [vmem:[#allocation8 + $0x2c0] sm:$0xff]
        %v503 = vld [vmem:[#allocation8 + $0x2c8] sm:$0xff]
        %v504 = vld [vmem:[#allocation8 + $0x2d0] sm:$0xff]
        %v505 = vld [vmem:[#allocation8 + $0x2d8] sm:$0xff]
        %v506 = vld [vmem:[#allocation8 + $0x2e0] sm:$0xff]
        %v507 = vld [vmem:[#allocation8 + $0x2e8] sm:$0xff]
        %v508 = vld [vmem:[#allocation8 + $0x2f0] sm:$0xff]
        %v509 = vld [vmem:[#allocation8 + $0x2f8] sm:$0xff]
        %v510 = vld [vmem:[#allocation8 + $0x300] sm:$0xff]
        %v511 = vld [vmem:[#allocation8 + $0x308] sm:$0xff]
        %v512 = vld [vmem:[#allocation8 + $0x310] sm:$0xff]
        %v513 = vld [vmem:[#allocation8 + $0x318] sm:$0xff]
        %v514 = vld [vmem:[#allocation8 + $0x320] sm:$0xff]
        %v515 = vld [vmem:[#allocation8 + $0x328] sm:$0xff]
        %v516 = vld [vmem:[#allocation8 + $0x330] sm:$0xff]
        %v517 = vld [vmem:[#allocation8 + $0x338] sm:$0xff]
        %v518 = vld [vmem:[#allocation8 + $0x340] sm:$0xff]
        %v519 = vld [vmem:[#allocation8 + $0x348] sm:$0xff]
        %v520 = vld [vmem:[#allocation8 + $0x350] sm:$0xff]
        %v521 = vld [vmem:[#allocation8 + $0x358] sm:$0xff]
        %v522 = vld [vmem:[#allocation8 + $0x360] sm:$0xff]
        %v523 = vld [vmem:[#allocation8 + $0x368] sm:$0xff]
        %v524 = vld [vmem:[#allocation8 + $0x370] sm:$0xff]
        %v525 = vld [vmem:[#allocation8 + $0x378] sm:$0xff]
        %v526 = vld [vmem:[#allocation8 + $0x380] sm:$0xff]
        %v527 = vld [vmem:[#allocation8 + $0x388] sm:$0xff]
        %v528 = vld [vmem:[#allocation8 + $0x390] sm:$0xff]
        %v529 = vld [vmem:[#allocation8 + $0x398] sm:$0xff]
        %v530 = vld [vmem:[#allocation8 + $0x3a0] sm:$0xff]
        %v531 = vld [vmem:[#allocation8 + $0x3a8] sm:$0xff]
        %v532 = vld [vmem:[#allocation8 + $0x3b0] sm:$0xff]
        %v533 = vld [vmem:[#allocation8 + $0x3b8] sm:$0xff]
        %v534 = vld [vmem:[#allocation8 + $0x3c0] sm:$0xff]
        %v535 = vld [vmem:[#allocation8 + $0x3c8] sm:$0xff]
        %v536 = vld [vmem:[#allocation8 + $0x3d0] sm:$0xff]
        %v537 = vld [vmem:[#allocation8 + $0x3d8] sm:$0xff]
        %v538 = vld [vmem:[#allocation8 + $0x3e0] sm:$0xff]
        %v539 = vld [vmem:[#allocation8 + $0x3e8] sm:$0xff]
        %v540 = vld [vmem:[#allocation8 + $0x3f0] sm:$0xff]
        %v541 = vld [vmem:[#allocation8 + $0x3f8] sm:$0xff]
        %v542 = vld [vmem:[#allocation8 + $0x400] sm:$0xff]
        %v543 = vld [vmem:[#allocation8 + $0x408] sm:$0xff]
        %v544 = vld [vmem:[#allocation8 + $0x410] sm:$0xff]
        %v545 = vld [vmem:[#allocation8 + $0x418] sm:$0xff]
        %v546 = vld [vmem:[#allocation8 + $0x420] sm:$0xff]
        %v547 = vld [vmem:[#allocation8 + $0x428] sm:$0xff]
        %v548 = vld [vmem:[#allocation8 + $0x430] sm:$0xff]
        %v549 = vld [vmem:[#allocation8 + $0x438] sm:$0xff]
        %v550 = vld [vmem:[#allocation8 + $0x440] sm:$0xff]
        %v551 = vld [vmem:[#allocation8 + $0x448] sm:$0xff]
        %v552 = vld [vmem:[#allocation8 + $0x450] sm:$0xff]
        %v553 = vld [vmem:[#allocation8 + $0x458] sm:$0xff]
        %v554 = vld [vmem:[#allocation8 + $0x460] sm:$0xff]
        %v555 = vld [vmem:[#allocation8 + $0x468] sm:$0xff]
        %v556 = vld [vmem:[#allocation8 + $0x470] sm:$0xff]
        %v557 = vld [vmem:[#allocation8 + $0x478] sm:$0xff]
        %v558 = vld [vmem:[#allocation8 + $0x480] sm:$0xff]
        %v559 = vld [vmem:[#allocation8 + $0x488] sm:$0xff]
        %v560 = vld [vmem:[#allocation8 + $0x490] sm:$0xff]
        %v561 = vld [vmem:[#allocation8 + $0x498] sm:$0xff]
        %v562 = vld [vmem:[#allocation8 + $0x4a0] sm:$0xff]
        %v563 = vld [vmem:[#allocation8 + $0x4a8] sm:$0xff]
        %v564 = vld [vmem:[#allocation8 + $0x4b0] sm:$0xff]
        %v565 = vld [vmem:[#allocation8 + $0x4b8] sm:$0xff]
        %v566 = vld [vmem:[#allocation8 + $0x4c0] sm:$0xff]
        %v567 = vld [vmem:[#allocation8 + $0x4c8] sm:$0xff]
        %v568 = vld [vmem:[#allocation8 + $0x4d0] sm:$0xff]
        %v569 = vld [vmem:[#allocation8 + $0x4d8] sm:$0xff]
        %v570 = vld [vmem:[#allocation8 + $0x4e0] sm:$0xff]
        %v571 = vld [vmem:[#allocation8 + $0x4e8] sm:$0xff]
        %v572 = vld [vmem:[#allocation8 + $0x4f0] sm:$0xff]
        %v573 = vld [vmem:[#allocation8 + $0x4f8] sm:$0xff]
        %v574 = vld [vmem:[#allocation8 + $0x500] sm:$0xff]
        %v575 = vld [vmem:[#allocation8 + $0x508] sm:$0xff]
        %v576 = vld [vmem:[#allocation8 + $0x510] sm:$0xff]
        %v577 = vld [vmem:[#allocation8 + $0x518] sm:$0xff]
        %v578 = vld [vmem:[#allocation8 + $0x520] sm:$0xff]
        %v579 = vld [vmem:[#allocation8 + $0x528] sm:$0xff]
        %v580 = vld [vmem:[#allocation8 + $0x530] sm:$0xff]
        %v581 = vld [vmem:[#allocation8 + $0x538] sm:$0xff]
        %v582 = vld [vmem:[#allocation8 + $0x540] sm:$0xff]
        %v583 = vld [vmem:[#allocation8 + $0x548] sm:$0xff]
        %v584 = vld [vmem:[#allocation8 + $0x550] sm:$0xff]
        %v585 = vld [vmem:[#allocation8 + $0x558] sm:$0xff]
        %v586 = vld [vmem:[#allocation8 + $0x560] sm:$0xff]
        %v587 = vld [vmem:[#allocation8 + $0x568] sm:$0xff]
        %v588 = vld [vmem:[#allocation8 + $0x570] sm:$0xff]
        %v589 = vld [vmem:[#allocation8 + $0x578] sm:$0xff]
        %v590 = vld [vmem:[#allocation8 + $0x580] sm:$0xff]
        %v591 = vld [vmem:[#allocation8 + $0x588] sm:$0xff]
        %v592 = vld [vmem:[#allocation8 + $0x590] sm:$0xff]
        %v593 = vld [vmem:[#allocation8 + $0x598] sm:$0xff]
        %v594 = vld [vmem:[#allocation8 + $0x5a0] sm:$0xff]
        %v595 = vld [vmem:[#allocation8 + $0x5a8] sm:$0xff]
        %v596 = vld [vmem:[#allocation8 + $0x5b0] sm:$0xff]
        %v597 = vld [vmem:[#allocation8 + $0x5b8] sm:$0xff]
        %v598 = vld [vmem:[#allocation8 + $0x5c0] sm:$0xff]
        %v599 = vld [vmem:[#allocation8 + $0x5c8] sm:$0xff]
        %v600 = vld [vmem:[#allocation8 + $0x5d0] sm:$0xff]
        %v601 = vld [vmem:[#allocation8 + $0x5d8] sm:$0xff]
        %v602 = vld [vmem:[#allocation8 + $0x5e0] sm:$0xff]
        %v603 = vld [vmem:[#allocation8 + $0x5e8] sm:$0xff]
        %v604 = vld [vmem:[#allocation8 + $0x5f0] sm:$0xff]
        %v605 = vld [vmem:[#allocation8 + $0x5f8] sm:$0xff]
        %v606 = vld [vmem:[%s3] sm:$0x3f]
        %v608 = vlaneseq
        %v609 = vshrl.u32 %v608, 7
        %v610 = vsub.s32 0, %v609
        %v611 = vrot.slane %v606, %v610
        %v612 = vlaneseq
        %v613 = vshrl.u32 %v612, 7
        %v614 = vsub.s32 1, %v613
        %v615 = vrot.slane %v606, %v614
        %v616 = vlaneseq
        %v617 = vshrl.u32 %v616, 7
        %v618 = vsub.s32 2, %v617
        %v619 = vrot.slane %v606, %v618
        %v620 = vlaneseq
        %v621 = vshrl.u32 %v620, 7
        %v622 = vsub.s32 3, %v621
        %v623 = vrot.slane %v606, %v622
        %v624 = vlaneseq
        %v625 = vshrl.u32 %v624, 7
        %v626 = vsub.s32 4, %v625
        %v627 = vrot.slane %v606, %v626
        %v628 = vlaneseq
        %v629 = vshrl.u32 %v628, 7
        %v630 = vsub.s32 5, %v629
        %v631 = vrot.slane %v606, %v630
        %638 = vmatprep.subr.mxu0 %v415
        %639 = vmatpush1.msra.mxu0 %v414
        %640 = vmatprep.subr.mxu0 %v421
        %641 = vmatpush1.msra.mxu0 %v420
        %642 = vmatprep.subr.mxu0 %v427
        %643 = vmatpush1.msra.mxu0 %v426
        %644 = vmatprep.subr.mxu0 %v433
        %645 = vmatpush1.msra.mxu0 %v432
        %646 = vmatprep.subr.mxu0 %v439
        %647 = vmatpush1.msra.mxu0 %v438
        %648 = vmatprep.subr.mxu0 %v445
        %649 = vmatpush1.msra.mxu0 %v444
        %650 = vmatprep.subr.mxu0 %v451
        %651 = vmatpush1.msra.mxu0 %v450
        %652 = vmatprep.subr.mxu0 %v457
        %653 = vmatpush1.msra.mxu0 %v456
        %654 = vmatprep.subr.mxu0 %v463
        %655 = vmatpush1.msra.mxu0 %v462
        %656 = vmatprep.subr.mxu0 %v469
        %657 = vmatpush1.msra.mxu0 %v468
        %658 = vmatprep.subr.mxu0 %v475
        %659 = vmatpush1.msra.mxu0 %v474
        %660 = vmatprep.subr.mxu0 %v481
        %661 = vmatpush1.msra.mxu0 %v480
        %662 = vmatprep.subr.mxu0 %v487
        %663 = vmatpush1.msra.mxu0 %v486
        %664 = vmatprep.subr.mxu0 %v493
        %665 = vmatpush1.msra.mxu0 %v492
        %666 = vmatprep.subr.mxu0 %v499
        %667 = vmatpush1.msra.mxu0 %v498
        %668 = vmatprep.subr.mxu0 %v505
        %669 = vmatpush1.msra.mxu0 %v504
        %670 = vmatprep.subr.mxu0 %v511
        %671 = vmatpush1.msra.mxu0 %v510
        %672 = vmatprep.subr.mxu0 %v517
        %673 = vmatpush1.msra.mxu0 %v516
        %674 = vmatprep.subr.mxu0 %v523
        %675 = vmatpush1.msra.mxu0 %v522
        %676 = vmatprep.subr.mxu0 %v529
        %677 = vmatpush1.msra.mxu0 %v528
        %678 = vmatprep.subr.mxu0 %v535
        %679 = vmatpush1.msra.mxu0 %v534
        %680 = vmatprep.subr.mxu0 %v541
        %681 = vmatpush1.msra.mxu0 %v540
        %682 = vmatprep.subr.mxu0 %v547
        %683 = vmatpush1.msra.mxu0 %v546
        %684 = vmatprep.subr.mxu0 %v553
        %685 = vmatpush1.msra.mxu0 %v552
        %686 = vmatprep.subr.mxu0 %v559
        %687 = vmatpush1.msra.mxu0 %v558
        %688 = vmatprep.subr.mxu0 %v565
        %689 = vmatpush1.msra.mxu0 %v564
        %690 = vmatprep.subr.mxu0 %v571
        %691 = vmatpush1.msra.mxu0 %v570
        %692 = vmatprep.subr.mxu0 %v577
        %693 = vmatpush1.msra.mxu0 %v576
        %694 = vmatprep.subr.mxu0 %v583
        %695 = vmatpush1.msra.mxu0 %v582
        %696 = vmatprep.subr.mxu0 %v589
        %697 = vmatpush1.msra.mxu0 %v588
        %698 = vmatprep.subr.mxu0 %v595
        %699 = vmatpush1.msra.mxu0 %v594
        %700 = vmatprep.subr.mxu0 %v601
        %701 = vmatpush1.msra.mxu0 %v600
        %702 = vmatprep.mubr.f32.mxu0 %v407
        %703 = vmatmul.mubr.f32.gmra.mrb[0].mxu0 %v406
        %v704 = vpop.f32.mrb[0].mxu0
        %v705 = vadd.f32 %v611, %v704
        %v706 = vpop.f32.mrb[0].mxu0
        %v707 = vadd.f32 %v615, %v706
        %708 = vdwg.mxu0
        %709 = vmatprep.subr.mxu0 %v417
        %710 = vmatpush1.msra.mxu0 %v416
        %711 = vmatprep.subr.mxu0 %v423
        %712 = vmatpush1.msra.mxu0 %v422
        %713 = vmatprep.subr.mxu0 %v429
        %714 = vmatpush1.msra.mxu0 %v428
        %715 = vmatprep.subr.mxu0 %v435
        %716 = vmatpush1.msra.mxu0 %v434
        %717 = vmatprep.subr.mxu0 %v441
        %718 = vmatpush1.msra.mxu0 %v440
        %719 = vmatprep.subr.mxu0 %v447
        %720 = vmatpush1.msra.mxu0 %v446
        %721 = vmatprep.subr.mxu0 %v453
        %722 = vmatpush1.msra.mxu0 %v452
        %723 = vmatprep.subr.mxu0 %v459
        %724 = vmatpush1.msra.mxu0 %v458
        %725 = vmatprep.subr.mxu0 %v465
        %726 = vmatpush1.msra.mxu0 %v464
        %727 = vmatprep.subr.mxu0 %v471
        %728 = vmatpush1.msra.mxu0 %v470
        %729 = vmatprep.subr.mxu0 %v477
        %730 = vmatpush1.msra.mxu0 %v476
        %731 = vmatprep.subr.mxu0 %v483
        %732 = vmatpush1.msra.mxu0 %v482
        %733 = vmatprep.subr.mxu0 %v489
        %734 = vmatpush1.msra.mxu0 %v488
        %735 = vmatprep.subr.mxu0 %v495
        %736 = vmatpush1.msra.mxu0 %v494
        %737 = vmatprep.subr.mxu0 %v501
        %738 = vmatpush1.msra.mxu0 %v500
        %739 = vmatprep.subr.mxu0 %v507
        %740 = vmatpush1.msra.mxu0 %v506
        %741 = vmatprep.subr.mxu0 %v513
        %742 = vmatpush1.msra.mxu0 %v512
        %743 = vmatprep.subr.mxu0 %v519
        %744 = vmatpush1.msra.mxu0 %v518
        %745 = vmatprep.subr.mxu0 %v525
        %746 = vmatpush1.msra.mxu0 %v524
        %747 = vmatprep.subr.mxu0 %v531
        %748 = vmatpush1.msra.mxu0 %v530
        %749 = vmatprep.subr.mxu0 %v537
        %750 = vmatpush1.msra.mxu0 %v536
        %751 = vmatprep.subr.mxu0 %v543
        %752 = vmatpush1.msra.mxu0 %v542
        %753 = vmatprep.subr.mxu0 %v549
        %754 = vmatpush1.msra.mxu0 %v548
        %755 = vmatprep.subr.mxu0 %v555
        %756 = vmatpush1.msra.mxu0 %v554
        %757 = vmatprep.subr.mxu0 %v561
        %758 = vmatpush1.msra.mxu0 %v560
        %759 = vmatprep.subr.mxu0 %v567
        %760 = vmatpush1.msra.mxu0 %v566
        %761 = vmatprep.subr.mxu0 %v573
        %762 = vmatpush1.msra.mxu0 %v572
        %763 = vmatprep.subr.mxu0 %v579
        %764 = vmatpush1.msra.mxu0 %v578
        %765 = vmatprep.subr.mxu0 %v585
        %766 = vmatpush1.msra.mxu0 %v584
        %767 = vmatprep.subr.mxu0 %v591
        %768 = vmatpush1.msra.mxu0 %v590
        %769 = vmatprep.subr.mxu0 %v597
        %770 = vmatpush1.msra.mxu0 %v596
        %771 = vmatprep.subr.mxu0 %v603
        %772 = vmatpush1.msra.mxu0 %v602
        %773 = vmatprep.mubr.f32.mxu0 %v407
        %774 = vmatmul.mubr.f32.gmra.mrb[0].mxu0 %v406
        %v775 = vpop.f32.mrb[0].mxu0
        %v776 = vadd.f32 %v619, %v775
        %v777 = vpop.f32.mrb[0].mxu0
        %v778 = vadd.f32 %v623, %v777
        %779 = vdwg.mxu0
        %780 = vmatprep.subr.mxu0 %v419
        %781 = vmatpush1.msra.mxu0 %v418
        %782 = vmatprep.subr.mxu0 %v425
        %783 = vmatpush1.msra.mxu0 %v424
        %784 = vmatprep.subr.mxu0 %v431
        %785 = vmatpush1.msra.mxu0 %v430
        %786 = vmatprep.subr.mxu0 %v437
        %787 = vmatpush1.msra.mxu0 %v436
        %788 = vmatprep.subr.mxu0 %v443
        %789 = vmatpush1.msra.mxu0 %v442
        %790 = vmatprep.subr.mxu0 %v449
        %791 = vmatpush1.msra.mxu0 %v448
        %792 = vmatprep.subr.mxu0 %v455
        %793 = vmatpush1.msra.mxu0 %v454
        %794 = vmatprep.subr.mxu0 %v461
        %795 = vmatpush1.msra.mxu0 %v460
        %796 = vmatprep.subr.mxu0 %v467
        %797 = vmatpush1.msra.mxu0 %v466
        %798 = vmatprep.subr.mxu0 %v473
        %799 = vmatpush1.msra.mxu0 %v472
        %800 = vmatprep.subr.mxu0 %v479
        %801 = vmatpush1.msra.mxu0 %v478
        %802 = vmatprep.subr.mxu0 %v485
        %803 = vmatpush1.msra.mxu0 %v484
        %804 = vmatprep.subr.mxu0 %v491
        %805 = vmatpush1.msra.mxu0 %v490
        %806 = vmatprep.subr.mxu0 %v497
        %807 = vmatpush1.msra.mxu0 %v496
        %808 = vmatprep.subr.mxu0 %v503
        %809 = vmatpush1.msra.mxu0 %v502
        %810 = vmatprep.subr.mxu0 %v509
        %811 = vmatpush1.msra.mxu0 %v508
        %812 = vmatprep.subr.mxu0 %v515
        %813 = vmatpush1.msra.mxu0 %v514
        %814 = vmatprep.subr.mxu0 %v521
        %815 = vmatpush1.msra.mxu0 %v520
        %816 = vmatprep.subr.mxu0 %v527
        %817 = vmatpush1.msra.mxu0 %v526
        %818 = vmatprep.subr.mxu0 %v533
        %819 = vmatpush1.msra.mxu0 %v532
        %820 = vmatprep.subr.mxu0 %v539
        %821 = vmatpush1.msra.mxu0 %v538
        %822 = vmatprep.subr.mxu0 %v545
        %823 = vmatpush1.msra.mxu0 %v544
        %824 = vmatprep.subr.mxu0 %v551
        %825 = vmatpush1.msra.mxu0 %v550
        %826 = vmatprep.subr.mxu0 %v557
        %827 = vmatpush1.msra.mxu0 %v556
        %828 = vmatprep.subr.mxu0 %v563
        %829 = vmatpush1.msra.mxu0 %v562
        %830 = vmatprep.subr.mxu0 %v569
        %831 = vmatpush1.msra.mxu0 %v568
        %832 = vmatprep.subr.mxu0 %v575
        %833 = vmatpush1.msra.mxu0 %v574
        %834 = vmatprep.subr.mxu0 %v581
        %835 = vmatpush1.msra.mxu0 %v580
        %836 = vmatprep.subr.mxu0 %v587
        %837 = vmatpush1.msra.mxu0 %v586
        %838 = vmatprep.subr.mxu0 %v593
        %839 = vmatpush1.msra.mxu0 %v592
        %840 = vmatprep.subr.mxu0 %v599
        %841 = vmatpush1.msra.mxu0 %v598
        %842 = vmatprep.subr.mxu0 %v605
        %843 = vmatpush1.msra.mxu0 %v604
        %844 = vmatprep.mubr.f32.mxu0 %v407
        %845 = vmatmul.mubr.f32.gmra.mrb[0].mxu0 %v406
        %v846 = vpop.f32.mrb[0].mxu0
        %v847 = vadd.f32 %v627, %v846
        %v848 = vpop.f32.mrb[0].mxu0
        %v849 = vadd.f32 %v631, %v848
        %850 = vdwg.mxu0
        %v851 = vadd.f32 %v408, %v705
        %v852 = vadd.f32 %v409, %v707
        %v853 = vxor.u32 %v851, 2147483648
        %v854 = vxor.u32 %v852, 2147483648
        %v855 = vmul.f32 %v853, 1.442695
        %v856 = vpow.pop %v855
        %v857 = vmul.f32 %v854, 1.442695
        %v858 = vpow.pop %v857
        %v859 = vadd.f32 %v856, 1.0
        %v860 = vadd.f32 %v858, 1.0
        %v861 = vrcp.pop %v859
        %v862 = vmul.f32 1.0, %v861
        %v863 = vrcp.pop %v860
        %v864 = vmul.f32 1.0, %v863
        %v865 = vadd.f32 %v410, %v776
        %v866 = vadd.f32 %v411, %v778
        %v867 = vxor.u32 %v865, 2147483648
        %v868 = vxor.u32 %v866, 2147483648
        %v869 = vmul.f32 %v867, 1.442695
        %v870 = vpow.pop %v869
        %v871 = vmul.f32 %v868, 1.442695
        %v872 = vpow.pop %v871
        %v873 = vadd.f32 %v870, 1.0
        %v874 = vadd.f32 %v872, 1.0
        %v875 = vrcp.pop %v873
        %v876 = vmul.f32 1.0, %v875
        %v877 = vrcp.pop %v874
        %v878 = vmul.f32 1.0, %v877
        %v879 = vmul.f32 %v862, %v847
        %v880 = vmul.f32 %v864, %v849
        %v881 = vadd.f32 %v412, %v879
        %v882 = vadd.f32 %v413, %v880
        %v883 = vtanh.pop %v881
        %v884 = vtanh.pop %v882
        %v885 = vsub.f32 1.0, %v876
        %v886 = vsub.f32 1.0, %v878
        %v887 = vmul.f32 %v885, %v883
        %v888 = vmul.f32 %v886, %v884
        %v889 = vmul.f32 %v876, %v406
        %v890 = vmul.f32 %v878, %v407
        %v891 = vadd.f32 %v887, %v889
        %v892 = vadd.f32 %v888, %v890
        %v893 = vld [vmem:[%s348] sm:$0xff]
        %v894 = vld [vmem:[%s348 + $0x8] sm:$0xff]
        %v895 = vmul.f32 %v893, %v891
        %v896 = vmul.f32 %v894, %v892
        %v897 = vsub.f32 1.0, %v893
        %v898 = vsub.f32 1.0, %v894
        %v899 = vmul.f32 %v897, %v406
        %v900 = vmul.f32 %v898, %v407
        %v901 = vadd.f32 %v895, %v899
        %v902 = vadd.f32 %v896, %v900
        %903 = vst [vmem:[#allocation2] sm:$0xff] %v901
        %904 = vst [vmem:[#allocation2 + $0x8] sm:$0xff] %v902
        %v905 = vmul.f32 %v901, %v893
        %v906 = vmul.f32 %v902, %v894
        %907 = vst [vmem:[%s389] sm:$0xff] %v905
        %908 = vst [vmem:[%s396] sm:$0xff] %v906
        %p909 = scmp.eq.s32.totalorder %s33, 7
        // Predicated region
        $region65: #{tpu_custom_call.1} parent=43 // pred_check
          %p910 = pneg %p909
        $region66: #{tpu_custom_call.1} parent=43 // pred_check_branch
          %912 = sbr.rel (%p910) target = $region68
        $region67: #{tpu_custom_call.1} parent=43 // pred_region
          %v913 = vld [vmem:[#allocation9] sm:$0xff]
          %v914 = vld [vmem:[#allocation9 + $0x8] sm:$0xff]
          %v915 = vld [vmem:[#allocation9 + $0x10] sm:$0xff]
          %v916 = vld [vmem:[#allocation9 + $0x18] sm:$0xff]
          %v917 = vld [vmem:[#allocation9 + $0x20] sm:$0xff]
          %v918 = vld [vmem:[#allocation9 + $0x28] sm:$0xff]
          %v919 = vld [vmem:[#allocation9 + $0x30] sm:$0xff]
          %v920 = vld [vmem:[#allocation9 + $0x38] sm:$0xff]
          %v921 = vld [vmem:[#allocation9 + $0x40] sm:$0xff]
          %v922 = vld [vmem:[#allocation9 + $0x48] sm:$0xff]
          %v923 = vld [vmem:[#allocation9 + $0x50] sm:$0xff]
          %v924 = vld [vmem:[#allocation9 + $0x58] sm:$0xff]
          %v925 = vld [vmem:[#allocation9 + $0x60] sm:$0xff]
          %v926 = vld [vmem:[#allocation9 + $0x68] sm:$0xff]
          %v927 = vld [vmem:[#allocation9 + $0x70] sm:$0xff]
          %v928 = vld [vmem:[#allocation9 + $0x78] sm:$0xff]
          %v929 = vld [vmem:[#allocation9 + $0x80] sm:$0xff]
          %v930 = vld [vmem:[#allocation9 + $0x88] sm:$0xff]
          %v931 = vld [vmem:[#allocation9 + $0x90] sm:$0xff]
          %v932 = vld [vmem:[#allocation9 + $0x98] sm:$0xff]
          %v933 = vld [vmem:[#allocation9 + $0xa0] sm:$0xff]
          %v934 = vld [vmem:[#allocation9 + $0xa8] sm:$0xff]
          %v935 = vld [vmem:[#allocation9 + $0xb0] sm:$0xff]
          %v936 = vld [vmem:[#allocation9 + $0xb8] sm:$0xff]
          %v937 = vld [vmem:[#allocation9 + $0xc0] sm:$0xff]
          %v938 = vld [vmem:[#allocation9 + $0xc8] sm:$0xff]
          %v939 = vld [vmem:[#allocation9 + $0xd0] sm:$0xff]
          %v940 = vld [vmem:[#allocation9 + $0xd8] sm:$0xff]
          %v941 = vld [vmem:[#allocation9 + $0xe0] sm:$0xff]
          %v942 = vld [vmem:[#allocation9 + $0xe8] sm:$0xff]
          %v943 = vld [vmem:[#allocation9 + $0xf0] sm:$0xff]
          %v944 = vld [vmem:[#allocation9 + $0xf8] sm:$0xff]
          %v945 = vld [vmem:[%s5] sm:$0x1]
          %v947 = vlaneseq
          %v948 = vshrl.u32 %v947, 7
          %v949 = vsub.s32 0, %v948
          %v950 = vrot.slane %v945, %v949
          %952 = vmatprep.subr.mxu0 0.0
          %953 = vmatpush1.msra.mxu0 %v913
          %954 = vmatprep.subr.mxu0 0.0
          %955 = vmatpush1.msra.mxu0 %v914
          %956 = vmatprep.subr.mxu0 0.0
          %957 = vmatpush1.msra.mxu0 %v915
          %958 = vmatprep.subr.mxu0 0.0
          %959 = vmatpush1.msra.mxu0 %v916
          %960 = vmatprep.subr.mxu0 0.0
          %961 = vmatpush1.msra.mxu0 %v917
          %962 = vmatprep.subr.mxu0 0.0
          %963 = vmatpush1.msra.mxu0 %v918
          %964 = vmatprep.subr.mxu0 0.0
          %965 = vmatpush1.msra.mxu0 %v919
          %966 = vmatprep.subr.mxu0 0.0
          %967 = vmatpush1.msra.mxu0 %v920
          %968 = vmatprep.subr.mxu0 0.0
          %969 = vmatpush1.msra.mxu0 %v921
          %970 = vmatprep.subr.mxu0 0.0
          %971 = vmatpush1.msra.mxu0 %v922
          %972 = vmatprep.subr.mxu0 0.0
          %973 = vmatpush1.msra.mxu0 %v923
          %974 = vmatprep.subr.mxu0 0.0
          %975 = vmatpush1.msra.mxu0 %v924
          %976 = vmatprep.subr.mxu0 0.0
          %977 = vmatpush1.msra.mxu0 %v925
          %978 = vmatprep.subr.mxu0 0.0
          %979 = vmatpush1.msra.mxu0 %v926
          %980 = vmatprep.subr.mxu0 0.0
          %981 = vmatpush1.msra.mxu0 %v927
          %982 = vmatprep.subr.mxu0 0.0
          %983 = vmatpush1.msra.mxu0 %v928
          %984 = vmatprep.subr.mxu0 0.0
          %985 = vmatpush1.msra.mxu0 %v929
          %986 = vmatprep.subr.mxu0 0.0
          %987 = vmatpush1.msra.mxu0 %v930
          %988 = vmatprep.subr.mxu0 0.0
          %989 = vmatpush1.msra.mxu0 %v931
          %990 = vmatprep.subr.mxu0 0.0
          %991 = vmatpush1.msra.mxu0 %v932
          %992 = vmatprep.subr.mxu0 0.0
          %993 = vmatpush1.msra.mxu0 %v933
          %994 = vmatprep.subr.mxu0 0.0
          %995 = vmatpush1.msra.mxu0 %v934
          %996 = vmatprep.subr.mxu0 0.0
          %997 = vmatpush1.msra.mxu0 %v935
          %998 = vmatprep.subr.mxu0 0.0
          %999 = vmatpush1.msra.mxu0 %v936
          %1000 = vmatprep.subr.mxu0 0.0
          %1001 = vmatpush1.msra.mxu0 %v937
          %1002 = vmatprep.subr.mxu0 0.0
          %1003 = vmatpush1.msra.mxu0 %v938
          %1004 = vmatprep.subr.mxu0 0.0
          %1005 = vmatpush1.msra.mxu0 %v939
          %1006 = vmatprep.subr.mxu0 0.0
          %1007 = vmatpush1.msra.mxu0 %v940
          %1008 = vmatprep.subr.mxu0 0.0
          %1009 = vmatpush1.msra.mxu0 %v941
          %1010 = vmatprep.subr.mxu0 0.0
          %1011 = vmatpush1.msra.mxu0 %v942
          %1012 = vmatprep.subr.mxu0 0.0
          %1013 = vmatpush1.msra.mxu0 %v943
          %1014 = vmatprep.subr.mxu0 0.0
          %1015 = vmatpush1.msra.mxu0 %v944
          %1016 = vmatprep.mubr.f32.mxu0 %v902
          %1017 = vmatmul.mubr.f32.gmra.mrb[0].mxu0 %v901
          %v1018 = vpop.f32.mrb[0].mxu0
          %v1019 = vadd.f32 %v950, %v1018
          %v1020 = vpop.f32.mrb[0].mxu0
          %1021 = vdwg.mxu0
          %v1022 = vtanh.pop %v1019
          %1023 = vst [vmem:[#allocation14] sm:$0xff] %v1022
        $region68: #{tpu_custom_call.1} parent=43 // pred_fallthru
          _
        %s1024 = sand.u32 %s177, 1
        %s1025 = scalar_lea.sflag [#allocation5], %s1024
        %s1026 = sand.u32 %s177, 1
        %s1027 = smul.addr %s1026, 8
        %s1028 = scalar_lea.vmem [#allocation11], %s1027
        %s1029 = sand.u32 %s33, 1
        %s1030 = scalar_lea.sflag [#allocation13], %s1029
        %s1031 = sand.u32 %s205, 1
        %s1032 = smul.addr %s1031, 8
        %s1033 = scalar_lea.vmem [#allocation12], %s1032
        // Predicated region
        $region69: #{tpu_custom_call.1} parent=43 // pred_check
          %p1034 = pneg %p187
        $region70: #{tpu_custom_call.1} parent=43 // pred_check_branch
          %1036 = sbr.rel (%p1034) target = $region72
        $region71: #{tpu_custom_call.1} parent=43 // pred_region
          %s1038 = ssub.s32 128, 128
          %1039 = vsyncadd %s1025, %s1038
          %s1040 = smul.addr %s33, 128
          %s1041 = scalar_lea.hbm %s6, %s1040
          %s1043 = sshll.u32 %s1028, 4
          %s1044 = int_to_ptr.vmem [resolvable:$true] %s1043
          %1046 = dma.vmem_to_hbm [thread:$0]  %s1044, 128, %s1041, %s1025
        $region72: #{tpu_custom_call.1} parent=43 // pred_fallthru
          _
        // Predicated region
        $region73: #{tpu_custom_call.1} parent=43 // pred_check
          %p1047 = pneg %p215
        $region74: #{tpu_custom_call.1} parent=43 // pred_check_branch
          %1049 = sbr.rel (%p1047) target = $region76
        $region75: #{tpu_custom_call.1} parent=43 // pred_region
          %s1050 = ssub.s32 7, %s33
          %s1052 = ssub.s32 128, 128
          %1053 = vsyncadd %s1030, %s1052
          %s1054 = smul.addr %s1050, 128
          %s1055 = scalar_lea.hbm %s7, %s1054
          %s1057 = sshll.u32 %s1033, 4
          %s1058 = int_to_ptr.vmem [resolvable:$true] %s1057
          %1060 = dma.vmem_to_hbm [thread:$0]  %s1058, 128, %s1055, %s1030
        $region76: #{tpu_custom_call.1} parent=43 // pred_fallthru
          _
        // Predicated region
        $region77: #{tpu_custom_call.1} parent=43 // pred_check
          %p1061 = pneg %p236
        $region78: #{tpu_custom_call.1} parent=43 // pred_check_branch
          %1063 = sbr.rel (%p1061) target = $region80
        $region79: #{tpu_custom_call.1} parent=43 // pred_region
          %s1065 = ssub.s32 128, 128
          %1066 = vsyncadd [#allocation13], %s1065
          %s1068 = sshll.u32 [#allocation14], 4
          %s1069 = int_to_ptr.vmem [resolvable:$true] %s1068
          %1071 = dma.vmem_to_hbm [thread:$0]  %s1069, 128, %s8, [#allocation13]
        $region80: #{tpu_custom_call.1} parent=43 // pred_fallthru
          _
        // Predicated region
        $region81: #{tpu_custom_call.1} parent=43 // pred_check
          %p1072 = pneg %p236
        $region82: #{tpu_custom_call.1} parent=43 // pred_check_branch
          %1074 = sbr.rel (%p1072) target = $region84
        $region83: #{tpu_custom_call.1} parent=43 // pred_region
          %1075 = dma.done [#allocation13], 128
        $region84: #{tpu_custom_call.1} parent=43 // pred_fallthru
          _
      $region44: #{tpu_custom_call.1} parent=5 // pred_fallthru
        _
      %p1076 = scmp.le.s32.totalorder 2, %s28
      // Predicated region
      $region85: #{tpu_custom_call.1} parent=5 // pred_check
        %p1077 = pneg %p1076
      $region86: #{tpu_custom_call.1} parent=5 // pred_check_branch
        %1079 = sbr.rel (%p1077) target = $region88
      $region87: #{tpu_custom_call.1} parent=5 // pred_region
        %s1080 = ssub.s32 %s28, 2
        // Predicated region
        $region89: #{tpu_custom_call.1} parent=87 // pred_check
          %p1081 = pneg %p193
        $region90: #{tpu_custom_call.1} parent=87 // pred_check_branch
          %1083 = sbr.rel (%p1081) target = $region92
        $region91: #{tpu_custom_call.1} parent=87 // pred_region
          %s1084 = sand.u32 %s178, 1
          %s1085 = scalar_lea.sflag [#allocation5], %s1084
          %s1086 = sand.u32 %s178, 1
          %s1087 = smul.addr %s1086, 8
          %s1088 = scalar_lea.vmem [#allocation11], %s1087
          %1089 = dma.done %s1085, 128
        $region92: #{tpu_custom_call.1} parent=87 // pred_fallthru
          _
        // Predicated region
        $region93: #{tpu_custom_call.1} parent=87 // pred_check
          %p1090 = pneg %p221
        $region94: #{tpu_custom_call.1} parent=87 // pred_check_branch
          %1092 = sbr.rel (%p1090) target = $region96
        $region95: #{tpu_custom_call.1} parent=87 // pred_region
          %s1093 = sand.u32 %s34, 1
          %s1094 = scalar_lea.sflag [#allocation13], %s1093
          %s1095 = sand.u32 %s206, 1
          %s1096 = smul.addr %s1095, 8
          %s1097 = scalar_lea.vmem [#allocation12], %s1096
          %1098 = dma.done %s1094, 128
        $region96: #{tpu_custom_call.1} parent=87 // pred_fallthru
          _
      $region88: #{tpu_custom_call.1} parent=5 // pred_fallthru
        _
    $region6: #{tpu_custom_call.1} parent=1 // loop_footer
      %s32 = sadd.s32 1, %s28
    $region7: #{tpu_custom_call.1} parent=1 // loop_footer_branch
      %27 = sbr.rel target = $region3
    $region8: #{tpu_custom_call.1} parent=1 // loop_exit
      _
    %1099 = vsyncpa [#allocation4], 1
    %s1100 = scalar_lea.sflag [#allocation4], 1
    %1101 = vsyncpa %s1100, 1
    %1102 = vsyncpa [#allocation7], 1
    %s1103 = scalar_lea.sflag [#allocation7], 1
    %1104 = vsyncpa %s1103, 1
    %1105 = vsyncpa [#allocation10], 1
    %1106 = vsyncpa [#allocation5], 1
    %s1107 = scalar_lea.sflag [#allocation5], 1
    %1108 = vsyncpa %s1107, 1
    %1109 = vsyncpa [#allocation13], 1
    %s1110 = scalar_lea.sflag [#allocation13], 1
    %1111 = vsyncpa %s1110, 1

</llo_original>
